<compile_context>
chip_gen: v7x
topology: tpu7x:2x2x1
jax: 0.10.0
libtpu: 0.0.40
codegen_flags: <defaults>
</compile_context>

<pallas_src>
import functools

import jax
import jax.numpy as jnp
from jax.experimental import pallas as pl
from jax.experimental.pallas import tpu as pltpu


def _round_up(x, m):
    return ((x + m - 1) // m) * m


# ---------------------------------------------------------------------------
# Pallas kernel: one grid step == one block of `time_block` timesteps.
# ---------------------------------------------------------------------------
def grud_kernel(
    x_ref,        # (TB*B, D)  values        (time-major rows, flattened)
    m_ref,        # (TB*B, D)  masks
    d_ref,        # (TB*B, D)  deltas
    xl_ref,       # (TB*B, D)  x_filled_locf
    emp_ref,      # (1, D)     empirical mean
    wgx_ref,      # (1, D)     w_gamma_x
    bgx_ref,      # (1, D)     b_gamma_x
    wgh_ref,      # (D, H)     w_gamma_h          [mxu dtype]
    bgh_ref,      # (1, H)     b_gamma_h
    wx3_ref,      # (D, 3H)    [Wzx | Wrx | Whx]  [mxu dtype]
    wm3_ref,      # (D, 3H)    [Wzm | Wrm | Whm]  [mxu dtype]
    bbig_ref,     # (1, 3H)    [b_z | b_r  | b_h]
    whzr_ref,     # (H, 2H)    [Wzh | Wrh]        [mxu dtype]
    whh_ref,      # (H, H)     Whh                [mxu dtype]
    seq_out_ref,  # (TB, B, H) hidden-sequence block (time-major)
    h_out_ref,    # (B, H)     final hidden state (resident carry)
    gate_scr,     # VMEM (TB*B, 3H) f32   precomputed x/m gate pre-activations
    gamh_scr,     # VMEM (TB*B, H)  f32   precomputed gamma_h
    *,
    t_total,      # static: true sequence length T
    time_block,   # static: TB (multiple of 8)
    batch,        # static: padded batch B (multiple of 8)
):
    f32 = jnp.float32
    blk = pl.program_id(0)
    B = batch
    H = h_out_ref.shape[1]
    mxu_dt = wx3_ref.dtype

    @pl.when(blk == 0)
    def _():
        # PyTorch module registers a zero 'hidden_state' buffer.
        h_out_ref[...] = jnp.zeros_like(h_out_ref)

    # ------------- block-level, h-independent precompute: M = TB*B -----------
    d = d_ref[...]
    m = m_ref[...]

    # gamma_x and input imputation (elementwise; VPU + EUP)
    gamma_x = jnp.exp(-jnp.maximum(wgx_ref[...] * d + bgx_ref[...], 0.0))
    x = m * x_ref[...] + (1.0 - m) * (
        gamma_x * xl_ref[...] + (1.0 - gamma_x) * emp_ref[...])

    # hidden-decay factor for every timestep in the block (MXU + EUP, hoisted)
    gamh_scr[...] = jnp.exp(-jnp.maximum(
        jnp.dot(d.astype(mxu_dt), wgh_ref[...], preferred_element_type=f32)
        + bgh_ref[...],
        0.0))

    # [x | m] contribution to the (z, r, h_tilde) pre-activations (MXU, hoisted)
    gate_scr[...] = (
        jnp.dot(x.astype(mxu_dt), wx3_ref[...], preferred_element_type=f32)
        + jnp.dot(m.astype(mxu_dt), wm3_ref[...], preferred_element_type=f32)
        + bbig_ref[...])

    w_h_zr = whzr_ref[...]
    w_hh = whh_ref[...]
    needs_mask = (t_total % time_block) != 0          # static Python bool

    # ------------------------- serial recurrence ----------------------------
    def step_one(tt, h):
        start = tt * B
        row = start if isinstance(start, int) else pl.multiple_of(start, 8)
        gam_h = gamh_scr[pl.ds(row, B), :]            # (B, H)
        pre_xm = gate_scr[pl.ds(row, B), :]           # (B, 3H)

        hd = gam_h * h
        pre_h = jnp.dot(hd.astype(mxu_dt), w_h_zr,
                        preferred_element_type=f32)   # (B, 2H)

        z = jax.nn.sigmoid(pre_xm[:, 0:H] + pre_h[:, 0:H])
        r = jax.nn.sigmoid(pre_xm[:, H:2 * H] + pre_h[:, H:2 * H])
        h_tilde = jnp.tanh(
            pre_xm[:, 2 * H:3 * H]
            + jnp.dot((r * hd).astype(mxu_dt), w_hh, preferred_element_type=f32))
        # dropout_type='mloss' with dropout=0.0 -> identity on h_tilde.
        h_new = (1.0 - z) * hd + z * h_tilde

        if needs_mask:  # only traced when T is not a multiple of TB
            valid = (blk * time_block + tt) < t_total
            h_new = jnp.where(valid, h_new, h)

        seq_out_ref[tt] = h_new.astype(seq_out_ref.dtype)
        return h_new

    h0 = h_out_ref[...]
    if time_block <= 8:
        # full unroll at trace time
        h_final = h0
        for tt in range(time_block):
            h_final = step_one(tt, h_final)
    else:
        # manual 2x unroll of the timestep loop (TB is a multiple of 8 -> even)
        h_final = jax.lax.fori_loop(
            0, time_block // 2,
            lambda i, h: step_one(2 * i + 1, step_one(2 * i, h)),
            h0)

    # Single resident-carry write per block.
    h_out_ref[...] = h_final


# ---------------------------------------------------------------------------
# Time-major entry point (no layout copies): inputs (T, B, D) -> ((T,B,H),(B,H))
# ---------------------------------------------------------------------------
@functools.partial(jax.jit, static_argnames=("time_block", "mxu_dtype", "seq_dtype"))
def grud_forward_time_major(values, masks, deltas, empirical_mean, x_filled_locf,
                            params, time_block=None, mxu_dtype=jnp.bfloat16,
                            seq_dtype=jnp.float32):
    T, B, D = values.shape
    H = params["w_gamma_h"].shape[1]
    f32 = jnp.float32

    B_pad = _round_up(B, 8)

    def est_vmem(tb):
        seq_in = 4 * 2 * tb * B_pad * D * 4                      # double-buffered
        seq_out = 2 * tb * B_pad * H * jnp.dtype(seq_dtype).itemsize
        scratch = tb * B_pad * 4 * H * 4                         # gates(3H)+gamma_h(H)
        w = (2 * D * 3 * H + D * H + 3 * H * H) * jnp.dtype(mxu_dtype).itemsize
        return seq_in + seq_out + scratch + w + (1 << 20)

    if time_block is None:
        # Largest block under a 48 MiB budget (v7x has 64 MiB VMEM per TC;
        # v5e/v6e have 128 MiB headroom to raise this).
        TB = min(256, _round_up(T, 8))
        while TB > 8 and est_vmem(TB) > 48 * 1024 * 1024:
            TB //= 2
        TB = max(8, (TB // 8) * 8)
    else:
        TB = int(time_block)

    n_blocks = pl.cdiv(T, TB)
    T_pad = n_blocks * TB
    vmem_limit = int(min(64 * 1024 * 1024,
                         max(32 * 1024 * 1024, 2 * est_vmem(TB))))

    def prep(a):  # (T, B, D) -> (T_pad * B_pad, D), zero-padded, time-major rows
        a = a.astype(f32)
        if T_pad != T or B_pad != B:
            a = jnp.pad(a, ((0, T_pad - T), (0, B_pad - B), (0, 0)))
        return a.reshape(T_pad * B_pad, D)

    x_f = prep(values)
    m_f = prep(masks)
    d_f = prep(deltas)
    xl_f = prep(x_filled_locf)

    row = lambda v: v.reshape(1, -1).astype(f32)
    mx = lambda w: w.astype(mxu_dtype)

    # Packed (h-independent) gate weights: gate order is [z | r | h].
    w_x3 = jnp.concatenate([mx(params["w_z_x"]), mx(params["w_r_x"]),
                            mx(params["w_h_x"])], axis=1)            # (D, 3H)
    w_m3 = jnp.concatenate([mx(params["w_z_m"]), mx(params["w_r_m"]),
                            mx(params["w_h_m"])], axis=1)            # (D, 3H)
    w_hzr = jnp.concatenate([mx(params["w_z_h"]), mx(params["w_r_h"])],
                            axis=1)                                  # (H, 2H)
    b_big = jnp.concatenate(
        [params["b_z"], params["b_r"], params["b_h"]]
    ).reshape(1, 3 * H).astype(f32)

    kernel = functools.partial(grud_kernel, t_total=T, time_block=TB, batch=B_pad)

    full = lambda shape: pl.BlockSpec(shape, lambda tb: (0,) * len(shape))
    seq_in_spec = pl.BlockSpec((TB * B_pad, D), lambda tb: (tb, 0))

    in_specs = [seq_in_spec, seq_in_spec, seq_in_spec, seq_in_spec,
                full((1, D)),            # empirical_mean
                full((1, D)),            # w_gamma_x
                full((1, D)),            # b_gamma_x
                full((D, H)),            # w_gamma_h
                full((1, H)),            # b_gamma_h
                full((D, 3 * H)),        # w_x3
                full((D, 3 * H)),        # w_m3
                full((1, 3 * H)),        # b_big
                full((H, 2 * H)),        # w_hzr
                full((H, H))]            # w_h_h
    out_specs = (
        pl.BlockSpec((TB, B_pad, H), lambda tb: (tb, 0, 0)),   # hidden sequence
        pl.BlockSpec((B_pad, H), lambda tb: (0, 0)),           # final h (carry)
    )
    out_shape = (
        jax.ShapeDtypeStruct((T_pad, B_pad, H), seq_dtype),
        jax.ShapeDtypeStruct((B_pad, H), f32),
    )

    seq_tm, h_final = pl.pallas_call(
        kernel,
        grid_spec=pltpu.PrefetchScalarGridSpec(
            num_scalar_prefetch=0,
            grid=(n_blocks,),
            in_specs=in_specs,
            out_specs=out_specs,
            scratch_shapes=[
                pltpu.VMEM((TB * B_pad, 3 * H), jnp.float32),   # gate pre-acts
                pltpu.VMEM((TB * B_pad, H), jnp.float32),       # gamma_h
            ],
        ),
        out_shape=out_shape,
        compiler_params=pltpu.CompilerParams(
            dimension_semantics=("arbitrary",),   # recurrence over time is serial
            vmem_limit_bytes=vmem_limit,
        ),
    )(
        x_f, m_f, d_f, xl_f,
        empirical_mean.reshape(1, D).astype(f32),
        row(params["w_gamma_x"]), row(params["b_gamma_x"]),
        mx(params["w_gamma_h"]), row(params["b_gamma_h"]),
        w_x3, w_m3, b_big, w_hzr, mx(params["w_h_h"]),
    )

    return seq_tm[:T, :B], h_final[:B]


# ---------------------------------------------------------------------------
# Batch-first wrapper matching the PyTorch API: inputs (B, T, D) -> (B, T, H).
# The swapaxes here are the only layout copies; callers with time-major data
# should call grud_forward_time_major directly.
# ---------------------------------------------------------------------------
@functools.partial(jax.jit, static_argnames=("time_block", "mxu_dtype", "seq_dtype"))
def grud_forward(values, masks, deltas, empirical_mean, x_filled_locf, params,
                 time_block=None, mxu_dtype=jnp.bfloat16, seq_dtype=jnp.float32):
    tm = lambda a: jnp.swapaxes(a, 0, 1)
    seq_tm, h = grud_forward_time_major(
        tm(values), tm(masks), tm(deltas), empirical_mean, tm(x_filled_locf),
        params, time_block=time_block, mxu_dtype=mxu_dtype, seq_dtype=seq_dtype)
    return jnp.swapaxes(seq_tm, 0, 1), h


# ---------------------------------------------------------------------------
# Pure-JAX reference (mirrors the PyTorch forward; Dropout(p=0) is identity).
# ---------------------------------------------------------------------------
def grud_reference(values, masks, deltas, empirical_mean, x_filled_locf, params):
    B, T, D = values.shape
    H = params["w_gamma_h"].shape[1]
    h = jnp.zeros((B, H), jnp.float32)

    def step(h, inp):
        x, m, d, xl = inp
        gamma_x = jnp.exp(-jax.nn.relu(params["w_gamma_x"] * d + params["b_gamma_x"]))
        gamma_h = jnp.exp(-jax.nn.relu(d @ params["w_gamma_h"] + params["b_gamma_h"]))
        x = m * x + (1 - m) * (gamma_x * xl + (1 - gamma_x) * empirical_mean)
        h2 = gamma_h * h
        z = jax.nn.sigmoid(x @ params["w_z_x"] + h2 @ params["w_z_h"]
                           + m @ params["w_z_m"] + params["b_z"])
        r = jax.nn.sigmoid(x @ params["w_r_x"] + h2 @ params["w_r_h"]
                           + m @ params["w_r_m"] + params["b_r"])
        h_tilde = jnp.tanh(x @ params["w_h_x"] + (r * h2) @ params["w_h_h"]
                           + m @ params["w_h_m"] + params["b_h"])
        h_new = (1 - z) * h2 + z * h_tilde
        return h_new, h_new

    xs = (jnp.swapaxes(values, 0, 1), jnp.swapaxes(masks, 0, 1),
          jnp.swapaxes(deltas, 0, 1), jnp.swapaxes(x_filled_locf, 0, 1))
    h_final, seq = jax.lax.scan(step, h, xs)
    return jnp.swapaxes(seq, 0, 1), h_final


# ---------------------------------------------------------------------------
# Parameter init (xavier-uniform for matrices, U[0,1) for vectors).
# ---------------------------------------------------------------------------
def init_params(key, D, H):
    def xavier(key, shape):
        fan_in, fan_out = shape
        lim = (6.0 / (fan_in + fan_out)) ** 0.5
        return jax.random.uniform(key, shape, jnp.float32, -lim, lim)

    names_2d = ["w_gamma_h", "w_r_x", "w_r_h", "w_r_m",
                "w_z_x", "w_z_h", "w_z_m", "w_h_x", "w_h_h", "w_h_m"]
    shapes_2d = [(D, H), (D, H), (H, H), (D, H),
                 (D, H), (H, H), (D, H), (D, H), (H, H), (D, H)]
    names_1d = ["w_gamma_x", "b_gamma_x", "b_gamma_h", "b_r", "b_z", "b_h"]
    shapes_1d = [(D,), (D,), (H,), (H,), (H,), (H,)]

    keys = jax.random.split(key, len(names_2d) + len(names_1d))
    params = {}
    i = 0
    for n, s in zip(names_2d, shapes_2d):
        params[n] = xavier(keys[i], s); i += 1
    for n, s in zip(names_1d, shapes_1d):
        params[n] = jax.random.uniform(keys[i], s, jnp.float32); i += 1
    return params


if __name__ == "__main__":
    B, T, D, H = 8, 16, 16, 32
    key = jax.random.PRNGKey(0)
    k_p, k_v, k_m, k_d, k_l, k_e = jax.random.split(key, 6)

    params = init_params(k_p, D, H)
    values = jax.random.normal(k_v, (B, T, D), jnp.float32)
    masks = (jax.random.uniform(k_m, (B, T, D)) > 0.3).astype(jnp.float32)
    deltas = jax.random.uniform(k_d, (B, T, D), jnp.float32, 0.0, 2.0)
    x_locf = jax.random.normal(k_l, (B, T, D), jnp.float32)
    emp_mean = jax.random.normal(k_e, (D,), jnp.float32)

    seq_ref, h_ref = grud_reference(values, masks, deltas, emp_mean, x_locf, params)

    # Exact path (f32 MXU operands): tight check against the reference.
    seq, h = grud_forward(values, masks, deltas, emp_mean, x_locf, params,
                          mxu_dtype=jnp.float32)
    jax.block_until_ready((seq, h))
    assert seq.shape == (B, T, H) and h.shape == (B, H)
    assert jnp.allclose(seq, seq_ref, atol=1e-4, rtol=1e-4)
    assert jnp.allclose(h, h_ref, atol=1e-4, rtol=1e-4)

    # Default fast path (bf16 MXU operands, f32 accumulation): loose check.
    seq_bf, h_bf = grud_forward(values, masks, deltas, emp_mean, x_locf, params)
    jax.block_until_ready((seq_bf, h_bf))
    assert bool(jnp.all(jnp.isfinite(seq_bf)))
    assert float(jnp.max(jnp.abs(seq_bf - seq_ref))) < 0.25

    print("KERNEL_OK")
</pallas_src>

<mosaic_0001>
module attributes {stable_mosaic.version = 11 : i64} {
  func.func @grud_kernel(%arg0: i32, %arg1: memref<128x16xf32, #tpu.memory_space<vmem>>, %arg2: memref<128x16xf32, #tpu.memory_space<vmem>>, %arg3: memref<128x16xf32, #tpu.memory_space<vmem>>, %arg4: memref<128x16xf32, #tpu.memory_space<vmem>>, %arg5: memref<1x16xf32, #tpu.memory_space<vmem>>, %arg6: memref<1x16xf32, #tpu.memory_space<vmem>>, %arg7: memref<1x16xf32, #tpu.memory_space<vmem>>, %arg8: memref<16x32xf32, #tpu.memory_space<vmem>>, %arg9: memref<1x32xf32, #tpu.memory_space<vmem>>, %arg10: memref<16x96xf32, #tpu.memory_space<vmem>>, %arg11: memref<16x96xf32, #tpu.memory_space<vmem>>, %arg12: memref<1x96xf32, #tpu.memory_space<vmem>>, %arg13: memref<32x64xf32, #tpu.memory_space<vmem>>, %arg14: memref<32x32xf32, #tpu.memory_space<vmem>>, %arg15: memref<16x8x32xf32, #tpu.memory_space<vmem>>, %arg16: memref<8x32xf32, #tpu.memory_space<vmem>>, %arg17: memref<128x96xf32, #tpu.memory_space<vmem>>, %arg18: memref<128x32xf32, #tpu.memory_space<vmem>>) attributes {dimension_semantics = [#tpu.dimension_semantics<arbitrary>], iteration_bounds = array<i64: 1>, scalar_prefetch = 0 : i64, scratch_operands = 2 : i64, tpu.core_type = #tpu.core_type<tc>, window_params = [{transform_indices = @transform_0, window_bounds = array<i64: 128, 16>}, {transform_indices = @transform_1, window_bounds = array<i64: 128, 16>}, {transform_indices = @transform_2, window_bounds = array<i64: 128, 16>}, {transform_indices = @transform_3, window_bounds = array<i64: 128, 16>}, {pipeline_mode = #tpu.pipeline_mode<synchronous>, transform_indices = @transform_4, window_bounds = array<i64: 1, 16>}, {pipeline_mode = #tpu.pipeline_mode<synchronous>, transform_indices = @transform_5, window_bounds = array<i64: 1, 16>}, {pipeline_mode = #tpu.pipeline_mode<synchronous>, transform_indices = @transform_6, window_bounds = array<i64: 1, 16>}, {pipeline_mode = #tpu.pipeline_mode<synchronous>, transform_indices = @transform_7, window_bounds = array<i64: 16, 32>}, {pipeline_mode = #tpu.pipeline_mode<synchronous>, transform_indices = @transform_8, window_bounds = array<i64: 1, 32>}, {pipeline_mode = #tpu.pipeline_mode<synchronous>, transform_indices = @transform_9, window_bounds = array<i64: 16, 96>}, {pipeline_mode = #tpu.pipeline_mode<synchronous>, transform_indices = @transform_10, window_bounds = array<i64: 16, 96>}, {pipeline_mode = #tpu.pipeline_mode<synchronous>, transform_indices = @transform_11, window_bounds = array<i64: 1, 96>}, {pipeline_mode = #tpu.pipeline_mode<synchronous>, transform_indices = @transform_12, window_bounds = array<i64: 32, 64>}, {pipeline_mode = #tpu.pipeline_mode<synchronous>, transform_indices = @transform_13, window_bounds = array<i64: 32, 32>}, {transform_indices = @transform_14, window_bounds = array<i64: 16, 8, 32>}, {pipeline_mode = #tpu.pipeline_mode<synchronous>, transform_indices = @transform_15, window_bounds = array<i64: 8, 32>}]} {
    %c0_i32 = arith.constant 0 : i32
    %0 = arith.cmpi eq, %arg0, %c0_i32 : i32
    %1 = arith.extui %0 : i1 to i32
    %c0_i32_0 = arith.constant 0 : i32
    %2 = arith.cmpi ne, %1, %c0_i32_0 : i32
    scf.if %2 {
      %cst_46 = arith.constant 0.000000e+00 : f32
      %56 = vector.broadcast %cst_46 : f32 to vector<8x32xf32>
      %c0_47 = arith.constant 0 : index
      %c0_48 = arith.constant 0 : index
      %57 = vector.load %arg16[%c0_47, %c0_48] : memref<8x32xf32, #tpu.memory_space<vmem>>, vector<8x32xf32>
      tpu.vector_store %arg16[%c0_47, %c0_48], %56 {strides = array<i32>} : memref<8x32xf32, #tpu.memory_space<vmem>>, vector<8x32xf32>,
    } else {
    }
    %c0 = arith.constant 0 : index
    %c0_1 = arith.constant 0 : index
    %3 = vector.load %arg3[%c0, %c0_1] : memref<128x16xf32, #tpu.memory_space<vmem>>, vector<128x16xf32>
    %c0_2 = arith.constant 0 : index
    %c0_3 = arith.constant 0 : index
    %4 = vector.load %arg2[%c0_2, %c0_3] : memref<128x16xf32, #tpu.memory_space<vmem>>, vector<128x16xf32>
    %c0_4 = arith.constant 0 : index
    %c0_5 = arith.constant 0 : index
    %5 = vector.load %arg6[%c0_4, %c0_5] : memref<1x16xf32, #tpu.memory_space<vmem>>, vector<1x16xf32>
    %6 = vector.broadcast %5 : vector<1x16xf32> to vector<128x16xf32>
    %7 = arith.mulf %6, %3 : vector<128x16xf32>
    %c0_6 = arith.constant 0 : index
    %c0_7 = arith.constant 0 : index
    %8 = vector.load %arg7[%c0_6, %c0_7] : memref<1x16xf32, #tpu.memory_space<vmem>>, vector<1x16xf32>
    %9 = vector.broadcast %8 : vector<1x16xf32> to vector<128x16xf32>
    %10 = arith.addf %7, %9 : vector<128x16xf32>
    %cst = arith.constant 0.000000e+00 : f32
    %11 = vector.broadcast %cst : f32 to vector<128x16xf32>
    %12 = arith.maximumf %10, %11 : vector<128x16xf32>
    %cst_8 = arith.constant 0.000000e+00 : f32
    %13 = vector.broadcast %cst_8 : f32 to vector<128x16xf32>
    %14 = arith.subf %13, %12 : vector<128x16xf32>
    %15 = math.exp %14 : vector<128x16xf32>
    %c0_9 = arith.constant 0 : index
    %c0_10 = arith.constant 0 : index
    %16 = vector.load %arg1[%c0_9, %c0_10] : memref<128x16xf32, #tpu.memory_space<vmem>>, vector<128x16xf32>
    %17 = arith.mulf %4, %16 : vector<128x16xf32>
    %cst_11 = arith.constant 1.000000e+00 : f32
    %18 = vector.broadcast %cst_11 : f32 to vector<128x16xf32>
    %19 = arith.subf %18, %4 : vector<128x16xf32>
    %c0_12 = arith.constant 0 : index
    %c0_13 = arith.constant 0 : index
    %20 = vector.load %arg4[%c0_12, %c0_13] : memref<128x16xf32, #tpu.memory_space<vmem>>, vector<128x16xf32>
    %21 = arith.mulf %15, %20 : vector<128x16xf32>
    %cst_14 = arith.constant 1.000000e+00 : f32
    %22 = vector.broadcast %cst_14 : f32 to vector<128x16xf32>
    %23 = arith.subf %22, %15 : vector<128x16xf32>
    %c0_15 = arith.constant 0 : index
    %c0_16 = arith.constant 0 : index
    %24 = vector.load %arg5[%c0_15, %c0_16] : memref<1x16xf32, #tpu.memory_space<vmem>>, vector<1x16xf32>
    %25 = vector.broadcast %24 : vector<1x16xf32> to vector<128x16xf32>
    %26 = arith.mulf %23, %25 : vector<128x16xf32>
    %27 = arith.addf %21, %26 : vector<128x16xf32>
    %28 = arith.mulf %19, %27 : vector<128x16xf32>
    %29 = arith.addf %17, %28 : vector<128x16xf32>
    %c0_17 = arith.constant 0 : index
    %c0_18 = arith.constant 0 : index
    %30 = vector.load %arg8[%c0_17, %c0_18] : memref<16x32xf32, #tpu.memory_space<vmem>>, vector<16x32xf32>
    %cst_19 = arith.constant dense<0.000000e+00> : vector<128x32xf32>
    %31 = tpu.matmul %3, %30, %cst_19 {dimension_numbers = #tpu.dot_dimension_numbers<[1], [0], [0], [1], [0, 0, 1, 1], [], []>} : vector<128x16xf32>, vector<16x32xf32>, vector<128x32xf32> -> vector<128x32xf32>
    %c0_20 = arith.constant 0 : index
    %c0_21 = arith.constant 0 : index
    %32 = vector.load %arg9[%c0_20, %c0_21] : memref<1x32xf32, #tpu.memory_space<vmem>>, vector<1x32xf32>
    %33 = vector.broadcast %32 : vector<1x32xf32> to vector<128x32xf32>
    %34 = arith.addf %31, %33 : vector<128x32xf32>
    %cst_22 = arith.constant 0.000000e+00 : f32
    %35 = vector.broadcast %cst_22 : f32 to vector<128x32xf32>
    %36 = arith.maximumf %34, %35 : vector<128x32xf32>
    %cst_23 = arith.constant 0.000000e+00 : f32
    %37 = vector.broadcast %cst_23 : f32 to vector<128x32xf32>
    %38 = arith.subf %37, %36 : vector<128x32xf32>
    %39 = math.exp %38 : vector<128x32xf32>
    %c0_24 = arith.constant 0 : index
    %c0_25 = arith.constant 0 : index
    %40 = vector.load %arg18[%c0_24, %c0_25] : memref<128x32xf32, #tpu.memory_space<vmem>>, vector<128x32xf32>
    tpu.vector_store %arg18[%c0_24, %c0_25], %39 {strides = array<i32>} : memref<128x32xf32, #tpu.memory_space<vmem>>, vector<128x32xf32>,
    %c0_26 = arith.constant 0 : index
    %c0_27 = arith.constant 0 : index
    %41 = vector.load %arg10[%c0_26, %c0_27] : memref<16x96xf32, #tpu.memory_space<vmem>>, vector<16x96xf32>
    %cst_28 = arith.constant dense<0.000000e+00> : vector<128x96xf32>
    %42 = tpu.matmul %29, %41, %cst_28 {dimension_numbers = #tpu.dot_dimension_numbers<[1], [0], [0], [1], [0, 0, 1, 1], [], []>} : vector<128x16xf32>, vector<16x96xf32>, vector<128x96xf32> -> vector<128x96xf32>
    %c0_29 = arith.constant 0 : index
    %c0_30 = arith.constant 0 : index
    %43 = vector.load %arg11[%c0_29, %c0_30] : memref<16x96xf32, #tpu.memory_space<vmem>>, vector<16x96xf32>
    %cst_31 = arith.constant dense<0.000000e+00> : vector<128x96xf32>
    %44 = tpu.matmul %4, %43, %cst_31 {dimension_numbers = #tpu.dot_dimension_numbers<[1], [0], [0], [1], [0, 0, 1, 1], [], []>} : vector<128x16xf32>, vector<16x96xf32>, vector<128x96xf32> -> vector<128x96xf32>
    %45 = arith.addf %42, %44 : vector<128x96xf32>
    %c0_32 = arith.constant 0 : index
    %c0_33 = arith.constant 0 : index
    %46 = vector.load %arg12[%c0_32, %c0_33] : memref<1x96xf32, #tpu.memory_space<vmem>>, vector<1x96xf32>
    %47 = vector.broadcast %46 : vector<1x96xf32> to vector<128x96xf32>
    %48 = arith.addf %45, %47 : vector<128x96xf32>
    %c0_34 = arith.constant 0 : index
    %c0_35 = arith.constant 0 : index
    %49 = vector.load %arg17[%c0_34, %c0_35] : memref<128x96xf32, #tpu.memory_space<vmem>>, vector<128x96xf32>
    tpu.vector_store %arg17[%c0_34, %c0_35], %48 {strides = array<i32>} : memref<128x96xf32, #tpu.memory_space<vmem>>, vector<128x96xf32>,
    %c0_36 = arith.constant 0 : index
    %c0_37 = arith.constant 0 : index
    %50 = vector.load %arg13[%c0_36, %c0_37] : memref<32x64xf32, #tpu.memory_space<vmem>>, vector<32x64xf32>
    %c0_38 = arith.constant 0 : index
    %c0_39 = arith.constant 0 : index
    %51 = vector.load %arg14[%c0_38, %c0_39] : memref<32x32xf32, #tpu.memory_space<vmem>>, vector<32x32xf32>
    %c0_40 = arith.constant 0 : index
    %c0_41 = arith.constant 0 : index
    %52 = vector.load %arg16[%c0_40, %c0_41] : memref<8x32xf32, #tpu.memory_space<vmem>>, vector<8x32xf32>
    %c0_i32_42 = arith.constant 0 : i32
    %c8_i32 = arith.constant 8 : i32
    %53 = arith.addi %c0_i32_42, %c8_i32 : i32
    %c1_i32 = arith.constant 1 : i32
    %54 = scf.for %arg19 = %c0_i32_42 to %53 step %c1_i32 iter_args(%arg20 = %52) -> (vector<8x32xf32>)  : i32 {
      %c2_i32 = arith.constant 2 : i32
      %56 = arith.muli %c2_i32, %arg19 : i32
      %c1_i32_46 = arith.constant 1 : i32
      %57 = arith.addi %56, %c1_i32_46 : i32
      %c2_i32_47 = arith.constant 2 : i32
      %58 = arith.muli %c2_i32_47, %arg19 : i32
      %c8_i32_48 = arith.constant 8 : i32
      %59 = arith.muli %58, %c8_i32_48 : i32
      %60 = tpu.assume_multiple %59, 8 : i32
      %61 = arith.index_cast %60 : i32 to index
      %c0_49 = arith.constant 0 : index
      %62 = vector.load %arg18[%61, %c0_49] : memref<128x32xf32, #tpu.memory_space<vmem>>, vector<8x32xf32>
      %63 = arith.index_cast %60 : i32 to index
      %c0_50 = arith.constant 0 : index
      %64 = vector.load %arg17[%63, %c0_50] : memref<128x96xf32, #tpu.memory_space<vmem>>, vector<8x96xf32>
      %65 = arith.mulf %62, %arg20 : vector<8x32xf32>
      %cst_51 = arith.constant dense<0.000000e+00> : vector<8x64xf32>
      %66 = tpu.matmul %65, %50, %cst_51 {dimension_numbers = #tpu.dot_dimension_numbers<[1], [0], [0], [1], [0, 0, 1, 1], [], []>} : vector<8x32xf32>, vector<32x64xf32>, vector<8x64xf32> -> vector<8x64xf32>
      %67 = vector.extract_strided_slice %64 {offsets = [0, 0], sizes = [8, 32], strides = [1, 1]} : vector<8x96xf32> to vector<8x32xf32>
      %68 = vector.extract_strided_slice %66 {offsets = [0, 0], sizes = [8, 32], strides = [1, 1]} : vector<8x64xf32> to vector<8x32xf32>
      %69 = arith.addf %67, %68 : vector<8x32xf32>
      %70 = arith.negf %69 : vector<8x32xf32>
      %71 = math.exp %70 : vector<8x32xf32>
      %cst_52 = arith.constant 1.000000e+00 : f32
      %72 = vector.broadcast %cst_52 : f32 to vector<8x32xf32>
      %73 = arith.addf %72, %71 : vector<8x32xf32>
      %74 = arith.divf %72, %73 : vector<8x32xf32>
      %75 = vector.extract_strided_slice %64 {offsets = [0, 32], sizes = [8, 32], strides = [1, 1]} : vector<8x96xf32> to vector<8x32xf32>
      %76 = vector.extract_strided_slice %66 {offsets = [0, 32], sizes = [8, 32], strides = [1, 1]} : vector<8x64xf32> to vector<8x32xf32>
      %77 = arith.addf %75, %76 : vector<8x32xf32>
      %78 = arith.negf %77 : vector<8x32xf32>
      %79 = math.exp %78 : vector<8x32xf32>
      %cst_53 = arith.constant 1.000000e+00 : f32
      %80 = vector.broadcast %cst_53 : f32 to vector<8x32xf32>
      %81 = arith.addf %80, %79 : vector<8x32xf32>
      %82 = arith.divf %80, %81 : vector<8x32xf32>
      %83 = vector.extract_strided_slice %64 {offsets = [0, 64], sizes = [8, 32], strides = [1, 1]} : vector<8x96xf32> to vector<8x32xf32>
      %84 = arith.mulf %82, %65 : vector<8x32xf32>
      %cst_54 = arith.constant dense<0.000000e+00> : vector<8x32xf32>
      %85 = tpu.matmul %84, %51, %cst_54 {dimension_numbers = #tpu.dot_dimension_numbers<[1], [0], [0], [1], [0, 0, 1, 1], [], []>} : vector<8x32xf32>, vector<32x32xf32>, vector<8x32xf32> -> vector<8x32xf32>
      %86 = arith.addf %83, %85 : vector<8x32xf32>
      %87 = math.tanh %86 : vector<8x32xf32>
      %cst_55 = arith.constant 1.000000e+00 : f32
      %88 = vector.broadcast %cst_55 : f32 to vector<8x32xf32>
      %89 = arith.subf %88, %74 : vector<8x32xf32>
      %90 = arith.mulf %89, %65 : vector<8x32xf32>
      %91 = arith.mulf %74, %87 : vector<8x32xf32>
      %92 = arith.addf %90, %91 : vector<8x32xf32>
      %93 = arith.index_cast %58 : i32 to index
      %c0_56 = arith.constant 0 : index
      %c0_57 = arith.constant 0 : index
      %94 = vector.load %arg15[%93, %c0_56, %c0_57] : memref<16x8x32xf32, #tpu.memory_space<vmem>>, vector<1x8x32xf32>
      %95 = vector.shape_cast %94 : vector<1x8x32xf32> to vector<8x32xf32>
      %96 = vector.shape_cast %92 : vector<8x32xf32> to vector<1x8x32xf32>
      tpu.vector_store %arg15[%93, %c0_56, %c0_57], %96 {strides = array<i32>} : memref<16x8x32xf32, #tpu.memory_space<vmem>>, vector<1x8x32xf32>,
      %c8_i32_58 = arith.constant 8 : i32
      %97 = arith.muli %57, %c8_i32_58 : i32
      %98 = tpu.assume_multiple %97, 8 : i32
      %99 = arith.index_cast %98 : i32 to index
      %c0_59 = arith.constant 0 : index
      %100 = vector.load %arg18[%99, %c0_59] : memref<128x32xf32, #tpu.memory_space<vmem>>, vector<8x32xf32>
      %101 = arith.index_cast %98 : i32 to index
      %c0_60 = arith.constant 0 : index
      %102 = vector.load %arg17[%101, %c0_60] : memref<128x96xf32, #tpu.memory_space<vmem>>, vector<8x96xf32>
      %103 = arith.mulf %100, %92 : vector<8x32xf32>
      %cst_61 = arith.constant dense<0.000000e+00> : vector<8x64xf32>
      %104 = tpu.matmul %103, %50, %cst_61 {dimension_numbers = #tpu.dot_dimension_numbers<[1], [0], [0], [1], [0, 0, 1, 1], [], []>} : vector<8x32xf32>, vector<32x64xf32>, vector<8x64xf32> -> vector<8x64xf32>
      %105 = vector.extract_strided_slice %102 {offsets = [0, 0], sizes = [8, 32], strides = [1, 1]} : vector<8x96xf32> to vector<8x32xf32>
      %106 = vector.extract_strided_slice %104 {offsets = [0, 0], sizes = [8, 32], strides = [1, 1]} : vector<8x64xf32> to vector<8x32xf32>
      %107 = arith.addf %105, %106 : vector<8x32xf32>
      %108 = arith.negf %107 : vector<8x32xf32>
      %109 = math.exp %108 : vector<8x32xf32>
      %cst_62 = arith.constant 1.000000e+00 : f32
      %110 = vector.broadcast %cst_62 : f32 to vector<8x32xf32>
      %111 = arith.addf %110, %109 : vector<8x32xf32>
      %112 = arith.divf %110, %111 : vector<8x32xf32>
      %113 = vector.extract_strided_slice %102 {offsets = [0, 32], sizes = [8, 32], strides = [1, 1]} : vector<8x96xf32> to vector<8x32xf32>
      %114 = vector.extract_strided_slice %104 {offsets = [0, 32], sizes = [8, 32], strides = [1, 1]} : vector<8x64xf32> to vector<8x32xf32>
      %115 = arith.addf %113, %114 : vector<8x32xf32>
      %116 = arith.negf %115 : vector<8x32xf32>
      %117 = math.exp %116 : vector<8x32xf32>
      %cst_63 = arith.constant 1.000000e+00 : f32
      %118 = vector.broadcast %cst_63 : f32 to vector<8x32xf32>
      %119 = arith.addf %118, %117 : vector<8x32xf32>
      %120 = arith.divf %118, %119 : vector<8x32xf32>
      %121 = vector.extract_strided_slice %102 {offsets = [0, 64], sizes = [8, 32], strides = [1, 1]} : vector<8x96xf32> to vector<8x32xf32>
      %122 = arith.mulf %120, %103 : vector<8x32xf32>
      %cst_64 = arith.constant dense<0.000000e+00> : vector<8x32xf32>
      %123 = tpu.matmul %122, %51, %cst_64 {dimension_numbers = #tpu.dot_dimension_numbers<[1], [0], [0], [1], [0, 0, 1, 1], [], []>} : vector<8x32xf32>, vector<32x32xf32>, vector<8x32xf32> -> vector<8x32xf32>
      %124 = arith.addf %121, %123 : vector<8x32xf32>
      %125 = math.tanh %124 : vector<8x32xf32>
      %cst_65 = arith.constant 1.000000e+00 : f32
      %126 = vector.broadcast %cst_65 : f32 to vector<8x32xf32>
      %127 = arith.subf %126, %112 : vector<8x32xf32>
      %128 = arith.mulf %127, %103 : vector<8x32xf32>
      %129 = arith.mulf %112, %125 : vector<8x32xf32>
      %130 = arith.addf %128, %129 : vector<8x32xf32>
      %131 = arith.index_cast %57 : i32 to index
      %c0_66 = arith.constant 0 : index
      %c0_67 = arith.constant 0 : index
      %132 = vector.load %arg15[%131, %c0_66, %c0_67] : memref<16x8x32xf32, #tpu.memory_space<vmem>>, vector<1x8x32xf32>
      %133 = vector.shape_cast %132 : vector<1x8x32xf32> to vector<8x32xf32>
      %134 = vector.shape_cast %130 : vector<8x32xf32> to vector<1x8x32xf32>
      tpu.vector_store %arg15[%131, %c0_66, %c0_67], %134 {strides = array<i32>} : memref<16x8x32xf32, #tpu.memory_space<vmem>>, vector<1x8x32xf32>,
      scf.yield %130 : vector<8x32xf32>
    }
    %c8_i32_43 = arith.constant 8 : i32
    %c0_44 = arith.constant 0 : index
    %c0_45 = arith.constant 0 : index
    %55 = vector.load %arg16[%c0_44, %c0_45] : memref<8x32xf32, #tpu.memory_space<vmem>>, vector<8x32xf32>
    tpu.vector_store %arg16[%c0_44, %c0_45], %54 {strides = array<i32>} : memref<8x32xf32, #tpu.memory_space<vmem>>, vector<8x32xf32>,
    return
  }
  func.func @transform_0(%arg0: i32) -> (i32, i32) {
    %c0_i32 = arith.constant 0 : i32
    %c0_i32_0 = arith.constant 0 : i32
    return %arg0, %c0_i32 : i32, i32
  }
  func.func @transform_1(%arg0: i32) -> (i32, i32) {
    %c0_i32 = arith.constant 0 : i32
    %c0_i32_0 = arith.constant 0 : i32
    return %arg0, %c0_i32 : i32, i32
  }
  func.func @transform_2(%arg0: i32) -> (i32, i32) {
    %c0_i32 = arith.constant 0 : i32
    %c0_i32_0 = arith.constant 0 : i32
    return %arg0, %c0_i32 : i32, i32
  }
  func.func @transform_3(%arg0: i32) -> (i32, i32) {
    %c0_i32 = arith.constant 0 : i32
    %c0_i32_0 = arith.constant 0 : i32
    return %arg0, %c0_i32 : i32, i32
  }
  func.func @transform_4(%arg0: i32) -> (i32, i32) {
    %c0_i32 = arith.constant 0 : i32
    %c0_i32_0 = arith.constant 0 : i32
    %c0_i32_1 = arith.constant 0 : i32
    return %c0_i32, %c0_i32_0 : i32, i32
  }
  func.func @transform_5(%arg0: i32) -> (i32, i32) {
    %c0_i32 = arith.constant 0 : i32
    %c0_i32_0 = arith.constant 0 : i32
    %c0_i32_1 = arith.constant 0 : i32
    return %c0_i32, %c0_i32_0 : i32, i32
  }
  func.func @transform_6(%arg0: i32) -> (i32, i32) {
    %c0_i32 = arith.constant 0 : i32
    %c0_i32_0 = arith.constant 0 : i32
    %c0_i32_1 = arith.constant 0 : i32
    return %c0_i32, %c0_i32_0 : i32, i32
  }
  func.func @transform_7(%arg0: i32) -> (i32, i32) {
    %c0_i32 = arith.constant 0 : i32
    %c0_i32_0 = arith.constant 0 : i32
    %c0_i32_1 = arith.constant 0 : i32
    return %c0_i32, %c0_i32_0 : i32, i32
  }
  func.func @transform_8(%arg0: i32) -> (i32, i32) {
    %c0_i32 = arith.constant 0 : i32
    %c0_i32_0 = arith.constant 0 : i32
    %c0_i32_1 = arith.constant 0 : i32
    return %c0_i32, %c0_i32_0 : i32, i32
  }
  func.func @transform_9(%arg0: i32) -> (i32, i32) {
    %c0_i32 = arith.constant 0 : i32
    %c0_i32_0 = arith.constant 0 : i32
    %c0_i32_1 = arith.constant 0 : i32
    return %c0_i32, %c0_i32_0 : i32, i32
  }
  func.func @transform_10(%arg0: i32) -> (i32, i32) {
    %c0_i32 = arith.constant 0 : i32
    %c0_i32_0 = arith.constant 0 : i32
    %c0_i32_1 = arith.constant 0 : i32
    return %c0_i32, %c0_i32_0 : i32, i32
  }
  func.func @transform_11(%arg0: i32) -> (i32, i32) {
    %c0_i32 = arith.constant 0 : i32
    %c0_i32_0 = arith.constant 0 : i32
    %c0_i32_1 = arith.constant 0 : i32
    return %c0_i32, %c0_i32_0 : i32, i32
  }
  func.func @transform_12(%arg0: i32) -> (i32, i32) {
    %c0_i32 = arith.constant 0 : i32
    %c0_i32_0 = arith.constant 0 : i32
    %c0_i32_1 = arith.constant 0 : i32
    return %c0_i32, %c0_i32_0 : i32, i32
  }
  func.func @transform_13(%arg0: i32) -> (i32, i32) {
    %c0_i32 = arith.constant 0 : i32
    %c0_i32_0 = arith.constant 0 : i32
    %c0_i32_1 = arith.constant 0 : i32
    return %c0_i32, %c0_i32_0 : i32, i32
  }
  func.func @transform_14(%arg0: i32) -> (i32, i32, i32) {
    %c0_i32 = arith.constant 0 : i32
    %c0_i32_0 = arith.constant 0 : i32
    %c0_i32_1 = arith.constant 0 : i32
    return %arg0, %c0_i32, %c0_i32_0 : i32, i32, i32
  }
  func.func @transform_15(%arg0: i32) -> (i32, i32) {
    %c0_i32 = arith.constant 0 : i32
    %c0_i32_0 = arith.constant 0 : i32
    %c0_i32_1 = arith.constant 0 : i32
    return %c0_i32, %c0_i32_0 : i32, i32
  }
}

</mosaic_0001>

<llo_original>
// kernel: grud_forward_time_major.1
$region0: #{grud_forward_time_major.1}
  #allocation0 [shape = 'u32[]', space=smem, size = 0x4, offset = 0x4, fixed_abs, tag = 'smem constant byte address 0x4 - core index']
  #allocation1 [shape = 'u32[144,128]{1,0:T(1,128)}', space=vmem, size = 0x12000, scoped, tag = 'internal scratch']
  #allocation2 [shape = 'f32[128,96]{1,0:T(8,128)}', space=vmem, size = 0x10000, scoped, tag = 'scratch operand']
  #allocation3 [shape = 'f32[128,32]{1,0:T(8,128)}', space=vmem, size = 0x10000, scoped, tag = 'scratch operand']
  %s0 = inlined_call_operand.vmem [shape: f32[128,16], index: 0, kind: input, shape index: {}]
  %s1 = inlined_call_operand.vmem [shape: f32[128,16], index: 1, kind: input, shape index: {}]
  %s2 = inlined_call_operand.hbm [shape: f32[128,16], index: 2, kind: input, shape index: {}]
  %s3 = inlined_call_operand.hbm [shape: f32[128,16], index: 3, kind: input, shape index: {}]
  %s4 = inlined_call_operand.vmem [shape: f32[1,16], index: 4, kind: input, shape index: {}]
  %s5 = inlined_call_operand.hbm [shape: f32[1,16], index: 5, kind: input, shape index: {}]
  %s6 = inlined_call_operand.hbm [shape: f32[1,16], index: 6, kind: input, shape index: {}]
  %s7 = inlined_call_operand.hbm [shape: f32[16,32], index: 7, kind: input, shape index: {}]
  %s8 = inlined_call_operand.hbm [shape: f32[1,32], index: 8, kind: input, shape index: {}]
  %s9 = inlined_call_operand.vmem [shape: f32[16,96], index: 9, kind: input, shape index: {}]
  %s10 = inlined_call_operand.vmem [shape: f32[16,96], index: 10, kind: input, shape index: {}]
  %s11 = inlined_call_operand.vmem [shape: f32[1,96], index: 11, kind: input, shape index: {}]
  %s12 = inlined_call_operand.vmem [shape: f32[32,64], index: 12, kind: input, shape index: {}]
  %s13 = inlined_call_operand.hbm [shape: f32[32,32], index: 13, kind: input, shape index: {}]
  %s14 = inlined_call_operand.hbm [shape: f32[16,8,32], index: 14, kind: output, shape index: {0}]
  %s15 = inlined_call_operand.hbm [shape: f32[8,32], index: 15, kind: output, shape index: {1}]
  %16 = xla_tuple %s14, %s15
  %s17 = sld [smem:[#allocation0]]
  $region113: #{grud_forward_time_major.1} parent=0
    _
  %s19 = ssub.s32 1, %s17
  %s20 = scalar_select 0, %s19, %s17
  $region1: #{grud_forward_time_major.1} parent=0
    #allocation4 [shape = 'u8[65536]{0}', space=vmem, size = 0x10000, scoped, tag = 'input window, operand 2, single buffered']
    #allocation5 [shape = 's32[1]{0}', space=sflag, size = 0x4, scoped, tag = 'scoped memory for grud_forward_time_major.1']
    #allocation6 [shape = 's32[1]{0}', space=sflag, size = 0x4, scoped, tag = 'scoped memory for grud_forward_time_major.1']
    #allocation7 [shape = 'u8[65536]{0}', space=vmem, size = 0x10000, scoped, tag = 'input window, operand 3, single buffered']
    #allocation8 [shape = 's32[1]{0}', space=sflag, size = 0x4, scoped, tag = 'scoped memory for grud_forward_time_major.1']
    #allocation9 [shape = 'u8[512]{0}', space=vmem, size = 0x400, scoped, tag = 'input window, operand 5, single buffered']
    #allocation10 [shape = 'u8[512]{0}', space=vmem, size = 0x400, scoped, tag = 'input window, operand 6, single buffered']
    #allocation11 [shape = 's32[1]{0}', space=sflag, size = 0x4, scoped, tag = 'scoped memory for grud_forward_time_major.1']
    #allocation12 [shape = 'u8[8192]{0}', space=vmem, size = 0x2000, scoped, tag = 'input window, operand 7, single buffered']
    #allocation13 [shape = 'u8[512]{0}', space=vmem, size = 0x400, scoped, tag = 'input window, operand 8, single buffered']
    #allocation14 [shape = 's32[1]{0}', space=sflag, size = 0x4, scoped, tag = 'scoped memory for grud_forward_time_major.1']
    #allocation15 [shape = 'u8[16384]{0}', space=vmem, size = 0x4000, scoped, tag = 'input window, operand 13, single buffered']
    #allocation16 [shape = 'u8[65536]{0}', space=vmem, size = 0x10000, scoped, tag = 'output window, operand 0, single buffered']
    #allocation17 [shape = 'u8[4096]{0}', space=vmem, size = 0x1000, scoped, tag = 'output window, operand 1, single buffered']
    #allocation18 [shape = 's32[1]{0}', space=sflag, size = 0x4, scoped, tag = 'scoped memory for grud_forward_time_major.1']
    %21 = vsyncpa [#allocation5], 0
    %22 = vsyncpa [#allocation8], 0
    %23 = vsyncpa [#allocation11], 0
    %24 = vsyncpa [#allocation14], 0
    %25 = vsyncpa [#allocation6], 0
    %26 = vsyncpa [#allocation18], 0
    // Predicated region
    $region2: #{grud_forward_time_major.1} parent=1 // pred_check
      _
    $region3: #{grud_forward_time_major.1} parent=1 // pred_check_branch
      %28 = sbr.rel (0) target = $region5
    $region4: #{grud_forward_time_major.1} parent=1 // pred_region
      _
    $region5: #{grud_forward_time_major.1} parent=1 // pred_fallthru
      _
    // Predicated region
    $region6: #{grud_forward_time_major.1} parent=1 // pred_check
      _
    $region7: #{grud_forward_time_major.1} parent=1 // pred_check_branch
      %30 = sbr.rel (0) target = $region9
    $region8: #{grud_forward_time_major.1} parent=1 // pred_region
      _
    $region9: #{grud_forward_time_major.1} parent=1 // pred_fallthru
      _
    // Predicated region
    $region10: #{grud_forward_time_major.1} parent=1 // pred_check
      _
    $region11: #{grud_forward_time_major.1} parent=1 // pred_check_branch
      %32 = sbr.rel (0) target = $region13
    $region12: #{grud_forward_time_major.1} parent=1 // pred_region
      %s34 = ssub.s32 2048, 2048
      %35 = vsyncadd [#allocation5], %s34
      %s36 = sshll.u32 [#allocation4], 4
      %s37 = int_to_ptr.vmem [resolvable:$true] %s36
      %42 = dma.hbm_to_vmem [thread:$0]  %s2, 2048, %s37, [#allocation5], 128, 128, 8
    $region13: #{grud_forward_time_major.1} parent=1 // pred_fallthru
      _
    // Predicated region
    $region14: #{grud_forward_time_major.1} parent=1 // pred_check
      _
    $region15: #{grud_forward_time_major.1} parent=1 // pred_check_branch
      %44 = sbr.rel (0) target = $region17
    $region16: #{grud_forward_time_major.1} parent=1 // pred_region
      %s46 = ssub.s32 2048, 2048
      %47 = vsyncadd [#allocation8], %s46
      %s48 = sshll.u32 [#allocation7], 4
      %s49 = int_to_ptr.vmem [resolvable:$true] %s48
      %54 = dma.hbm_to_vmem [thread:$0]  %s3, 2048, %s49, [#allocation8], 128, 128, 8
    $region17: #{grud_forward_time_major.1} parent=1 // pred_fallthru
      _
    // Predicated region
    $region18: #{grud_forward_time_major.1} parent=1 // pred_check
      _
    $region19: #{grud_forward_time_major.1} parent=1 // pred_check_branch
      %56 = sbr.rel (0) target = $region21
    $region20: #{grud_forward_time_major.1} parent=1 // pred_region
      _
    $region21: #{grud_forward_time_major.1} parent=1 // pred_fallthru
      _
    // Predicated region
    $region22: #{grud_forward_time_major.1} parent=1 // pred_check
      _
    $region23: #{grud_forward_time_major.1} parent=1 // pred_check_branch
      %58 = sbr.rel (0) target = $region25
    $region24: #{grud_forward_time_major.1} parent=1 // pred_region
      %s60 = ssub.s32 16, 16
      %61 = vsyncadd [#allocation8], %s60
      %s63 = sshll.u32 [#allocation9], 4
      %s64 = int_to_ptr.vmem [resolvable:$true] %s63
      %66 = dma.hbm_to_vmem [thread:$0]  %s5, 16, %s64, [#allocation8]
    $region25: #{grud_forward_time_major.1} parent=1 // pred_fallthru
      _
    // Predicated region
    $region26: #{grud_forward_time_major.1} parent=1 // pred_check
      _
    $region27: #{grud_forward_time_major.1} parent=1 // pred_check_branch
      %68 = sbr.rel (0) target = $region29
    $region28: #{grud_forward_time_major.1} parent=1 // pred_region
      %s70 = ssub.s32 16, 16
      %71 = vsyncadd [#allocation11], %s70
      %s73 = sshll.u32 [#allocation10], 4
      %s74 = int_to_ptr.vmem [resolvable:$true] %s73
      %76 = dma.hbm_to_vmem [thread:$0]  %s6, 16, %s74, [#allocation11]
    $region29: #{grud_forward_time_major.1} parent=1 // pred_fallthru
      _
    // Predicated region
    $region30: #{grud_forward_time_major.1} parent=1 // pred_check
      _
    $region31: #{grud_forward_time_major.1} parent=1 // pred_check_branch
      %78 = sbr.rel (0) target = $region33
    $region32: #{grud_forward_time_major.1} parent=1 // pred_region
      %s80 = ssub.s32 256, 256
      %81 = vsyncadd [#allocation11], %s80
      %s82 = sshll.u32 [#allocation12], 4
      %s83 = int_to_ptr.vmem [resolvable:$true] %s82
      %88 = dma.hbm_to_vmem [thread:$0]  %s7, 256, %s83, [#allocation11], 128, 128, 8
    $region33: #{grud_forward_time_major.1} parent=1 // pred_fallthru
      _
    // Predicated region
    $region34: #{grud_forward_time_major.1} parent=1 // pred_check
      _
    $region35: #{grud_forward_time_major.1} parent=1 // pred_check_branch
      %90 = sbr.rel (0) target = $region37
    $region36: #{grud_forward_time_major.1} parent=1 // pred_region
      %s92 = ssub.s32 16, 16
      %93 = vsyncadd [#allocation14], %s92
      %s95 = sshll.u32 [#allocation13], 4
      %s96 = int_to_ptr.vmem [resolvable:$true] %s95
      %98 = dma.hbm_to_vmem [thread:$0]  %s8, 16, %s96, [#allocation14]
    $region37: #{grud_forward_time_major.1} parent=1 // pred_fallthru
      _
    // Predicated region
    $region38: #{grud_forward_time_major.1} parent=1 // pred_check
      _
    $region39: #{grud_forward_time_major.1} parent=1 // pred_check_branch
      %100 = sbr.rel (0) target = $region41
    $region40: #{grud_forward_time_major.1} parent=1 // pred_region
      _
    $region41: #{grud_forward_time_major.1} parent=1 // pred_fallthru
      _
    // Predicated region
    $region42: #{grud_forward_time_major.1} parent=1 // pred_check
      _
    $region43: #{grud_forward_time_major.1} parent=1 // pred_check_branch
      %102 = sbr.rel (0) target = $region45
    $region44: #{grud_forward_time_major.1} parent=1 // pred_region
      _
    $region45: #{grud_forward_time_major.1} parent=1 // pred_fallthru
      _
    // Predicated region
    $region46: #{grud_forward_time_major.1} parent=1 // pred_check
      _
    $region47: #{grud_forward_time_major.1} parent=1 // pred_check_branch
      %104 = sbr.rel (0) target = $region49
    $region48: #{grud_forward_time_major.1} parent=1 // pred_region
      _
    $region49: #{grud_forward_time_major.1} parent=1 // pred_fallthru
      _
    // Predicated region
    $region50: #{grud_forward_time_major.1} parent=1 // pred_check
      _
    $region51: #{grud_forward_time_major.1} parent=1 // pred_check_branch
      %106 = sbr.rel (0) target = $region53
    $region52: #{grud_forward_time_major.1} parent=1 // pred_region
      _
    $region53: #{grud_forward_time_major.1} parent=1 // pred_fallthru
      _
    // Predicated region
    $region54: #{grud_forward_time_major.1} parent=1 // pred_check
      _
    $region55: #{grud_forward_time_major.1} parent=1 // pred_check_branch
      %108 = sbr.rel (0) target = $region57
    $region56: #{grud_forward_time_major.1} parent=1 // pred_region
      %s110 = ssub.s32 512, 512
      %111 = vsyncadd [#allocation14], %s110
      %s112 = sshll.u32 [#allocation15], 4
      %s113 = int_to_ptr.vmem [resolvable:$true] %s112
      %118 = dma.hbm_to_vmem [thread:$0]  %s13, 512, %s113, [#allocation14], 128, 128, 8
    $region57: #{grud_forward_time_major.1} parent=1 // pred_fallthru
      _
    // Predicated region
    $region58: #{grud_forward_time_major.1} parent=1 // pred_check
      _
    $region59: #{grud_forward_time_major.1} parent=1 // pred_check_branch
      %120 = sbr.rel (0) target = $region61
    $region60: #{grud_forward_time_major.1} parent=1 // pred_region
      %121 = dma.done [#allocation5], 2048
    $region61: #{grud_forward_time_major.1} parent=1 // pred_fallthru
      _
    // Predicated region
    $region62: #{grud_forward_time_major.1} parent=1 // pred_check
      _
    $region63: #{grud_forward_time_major.1} parent=1 // pred_check_branch
      %123 = sbr.rel (0) target = $region65
    $region64: #{grud_forward_time_major.1} parent=1 // pred_region
      %124 = dma.done [#allocation8], 2048
    $region65: #{grud_forward_time_major.1} parent=1 // pred_fallthru
      _
    // Predicated region
    $region66: #{grud_forward_time_major.1} parent=1 // pred_check
      _
    $region67: #{grud_forward_time_major.1} parent=1 // pred_check_branch
      %126 = sbr.rel (0) target = $region69
    $region68: #{grud_forward_time_major.1} parent=1 // pred_region
      %127 = dma.done [#allocation8], 16
    $region69: #{grud_forward_time_major.1} parent=1 // pred_fallthru
      _
    // Predicated region
    $region70: #{grud_forward_time_major.1} parent=1 // pred_check
      _
    $region71: #{grud_forward_time_major.1} parent=1 // pred_check_branch
      %129 = sbr.rel (0) target = $region73
    $region72: #{grud_forward_time_major.1} parent=1 // pred_region
      %130 = dma.done [#allocation11], 16
    $region73: #{grud_forward_time_major.1} parent=1 // pred_fallthru
      _
    // Predicated region
    $region74: #{grud_forward_time_major.1} parent=1 // pred_check
      _
    $region75: #{grud_forward_time_major.1} parent=1 // pred_check_branch
      %132 = sbr.rel (0) target = $region77
    $region76: #{grud_forward_time_major.1} parent=1 // pred_region
      %133 = dma.done [#allocation11], 256
    $region77: #{grud_forward_time_major.1} parent=1 // pred_fallthru
      _
    // Predicated region
    $region78: #{grud_forward_time_major.1} parent=1 // pred_check
      _
    $region79: #{grud_forward_time_major.1} parent=1 // pred_check_branch
      %135 = sbr.rel (0) target = $region81
    $region80: #{grud_forward_time_major.1} parent=1 // pred_region
      %136 = dma.done [#allocation14], 16
    $region81: #{grud_forward_time_major.1} parent=1 // pred_fallthru
      _
    // Predicated region
    $region82: #{grud_forward_time_major.1} parent=1 // pred_check
      _
    $region83: #{grud_forward_time_major.1} parent=1 // pred_check_branch
      %138 = sbr.rel (0) target = $region85
    $region84: #{grud_forward_time_major.1} parent=1 // pred_region
      %139 = dma.done [#allocation14], 512
    $region85: #{grud_forward_time_major.1} parent=1 // pred_fallthru
      _
    %p140 = scmp.eq.s32.totalorder 0, 0
    // Predicated region
    $region86: #{grud_forward_time_major.1} parent=1 // pred_check
      %p141 = pneg %p140
    $region87: #{grud_forward_time_major.1} parent=1 // pred_check_branch
      %143 = sbr.rel (%p141) target = $region89
    $region88: #{grud_forward_time_major.1} parent=1 // pred_region
      %vm144 = vcmask 261120
      %145 = vst.msk [vmem:[#allocation17] sm:$0xff] %vm144, 0.0
    $region89: #{grud_forward_time_major.1} parent=1 // pred_fallthru
      _
    %v146 = vld [vmem:[#allocation4] sm:$0xff]
    %v147 = vld [vmem:[#allocation4 + $0x8] sm:$0xff]
    %v148 = vld [vmem:[#allocation4 + $0x10] sm:$0xff]
    %v149 = vld [vmem:[#allocation4 + $0x18] sm:$0xff]
    %v150 = vld [vmem:[#allocation4 + $0x20] sm:$0xff]
    %v151 = vld [vmem:[#allocation4 + $0x28] sm:$0xff]
    %v152 = vld [vmem:[#allocation4 + $0x30] sm:$0xff]
    %v153 = vld [vmem:[#allocation4 + $0x38] sm:$0xff]
    %v154 = vld [vmem:[#allocation4 + $0x40] sm:$0xff]
    %v155 = vld [vmem:[#allocation4 + $0x48] sm:$0xff]
    %v156 = vld [vmem:[#allocation4 + $0x50] sm:$0xff]
    %v157 = vld [vmem:[#allocation4 + $0x58] sm:$0xff]
    %v158 = vld [vmem:[#allocation4 + $0x60] sm:$0xff]
    %v159 = vld [vmem:[#allocation4 + $0x68] sm:$0xff]
    %v160 = vld [vmem:[#allocation4 + $0x70] sm:$0xff]
    %v161 = vld [vmem:[#allocation4 + $0x78] sm:$0xff]
    %v162 = vld [vmem:[%s1] sm:$0xff]
    %v163 = vld [vmem:[%s1 + $0x8] sm:$0xff]
    %v164 = vld [vmem:[%s1 + $0x10] sm:$0xff]
    %v165 = vld [vmem:[%s1 + $0x18] sm:$0xff]
    %v166 = vld [vmem:[%s1 + $0x20] sm:$0xff]
    %v167 = vld [vmem:[%s1 + $0x28] sm:$0xff]
    %v168 = vld [vmem:[%s1 + $0x30] sm:$0xff]
    %v169 = vld [vmem:[%s1 + $0x38] sm:$0xff]
    %v170 = vld [vmem:[%s1 + $0x40] sm:$0xff]
    %v171 = vld [vmem:[%s1 + $0x48] sm:$0xff]
    %v172 = vld [vmem:[%s1 + $0x50] sm:$0xff]
    %v173 = vld [vmem:[%s1 + $0x58] sm:$0xff]
    %v174 = vld [vmem:[%s1 + $0x60] sm:$0xff]
    %v175 = vld [vmem:[%s1 + $0x68] sm:$0xff]
    %v176 = vld [vmem:[%s1 + $0x70] sm:$0xff]
    %v177 = vld [vmem:[%s1 + $0x78] sm:$0xff]
    %v178 = vld [vmem:[#allocation9] sm:$0x1]
    %v180 = vlaneseq
    %v181 = vshrl.u32 %v180, 7
    %v182 = vsub.s32 0, %v181
    %v183 = vrot.slane %v178, %v182
    %v185 = vmul.f32 %v183, %v146
    %v186 = vmul.f32 %v183, %v147
    %v187 = vmul.f32 %v183, %v148
    %v188 = vmul.f32 %v183, %v149
    %v189 = vmul.f32 %v183, %v150
    %v190 = vmul.f32 %v183, %v151
    %v191 = vmul.f32 %v183, %v152
    %v192 = vmul.f32 %v183, %v153
    %v193 = vmul.f32 %v183, %v154
    %v194 = vmul.f32 %v183, %v155
    %v195 = vmul.f32 %v183, %v156
    %v196 = vmul.f32 %v183, %v157
    %v197 = vmul.f32 %v183, %v158
    %v198 = vmul.f32 %v183, %v159
    %v199 = vmul.f32 %v183, %v160
    %v200 = vmul.f32 %v183, %v161
    %v201 = vld [vmem:[#allocation10] sm:$0x1]
    %v203 = vlaneseq
    %v204 = vshrl.u32 %v203, 7
    %v205 = vsub.s32 0, %v204
    %v206 = vrot.slane %v201, %v205
    %v208 = vadd.f32 %v185, %v206
    %v209 = vadd.f32 %v186, %v206
    %v210 = vadd.f32 %v187, %v206
    %v211 = vadd.f32 %v188, %v206
    %v212 = vadd.f32 %v189, %v206
    %v213 = vadd.f32 %v190, %v206
    %v214 = vadd.f32 %v191, %v206
    %v215 = vadd.f32 %v192, %v206
    %v216 = vadd.f32 %v193, %v206
    %v217 = vadd.f32 %v194, %v206
    %v218 = vadd.f32 %v195, %v206
    %v219 = vadd.f32 %v196, %v206
    %v220 = vadd.f32 %v197, %v206
    %v221 = vadd.f32 %v198, %v206
    %v222 = vadd.f32 %v199, %v206
    %v223 = vadd.f32 %v200, %v206
    %v224 = vmax.f32 %v208, 0.0
    %v225 = vmax.f32 %v209, 0.0
    %v226 = vmax.f32 %v210, 0.0
    %v227 = vmax.f32 %v211, 0.0
    %v228 = vmax.f32 %v212, 0.0
    %v229 = vmax.f32 %v213, 0.0
    %v230 = vmax.f32 %v214, 0.0
    %v231 = vmax.f32 %v215, 0.0
    %v232 = vmax.f32 %v216, 0.0
    %v233 = vmax.f32 %v217, 0.0
    %v234 = vmax.f32 %v218, 0.0
    %v235 = vmax.f32 %v219, 0.0
    %v236 = vmax.f32 %v220, 0.0
    %v237 = vmax.f32 %v221, 0.0
    %v238 = vmax.f32 %v222, 0.0
    %v239 = vmax.f32 %v223, 0.0
    %v240 = vsub.f32 0.0, %v224
    %v241 = vsub.f32 0.0, %v225
    %v242 = vsub.f32 0.0, %v226
    %v243 = vsub.f32 0.0, %v227
    %v244 = vsub.f32 0.0, %v228
    %v245 = vsub.f32 0.0, %v229
    %v246 = vsub.f32 0.0, %v230
    %v247 = vsub.f32 0.0, %v231
    %v248 = vsub.f32 0.0, %v232
    %v249 = vsub.f32 0.0, %v233
    %v250 = vsub.f32 0.0, %v234
    %v251 = vsub.f32 0.0, %v235
    %v252 = vsub.f32 0.0, %v236
    %v253 = vsub.f32 0.0, %v237
    %v254 = vsub.f32 0.0, %v238
    %v255 = vsub.f32 0.0, %v239
    %v256 = vmul.f32 %v240, 1.442695
    %v257 = vpow.pop %v256
    %v258 = vmul.f32 %v241, 1.442695
    %v259 = vpow.pop %v258
    %v260 = vmul.f32 %v242, 1.442695
    %v261 = vpow.pop %v260
    %v262 = vmul.f32 %v243, 1.442695
    %v263 = vpow.pop %v262
    %v264 = vmul.f32 %v244, 1.442695
    %v265 = vpow.pop %v264
    %v266 = vmul.f32 %v245, 1.442695
    %v267 = vpow.pop %v266
    %v268 = vmul.f32 %v246, 1.442695
    %v269 = vpow.pop %v268
    %v270 = vmul.f32 %v247, 1.442695
    %v271 = vpow.pop %v270
    %v272 = vmul.f32 %v248, 1.442695
    %v273 = vpow.pop %v272
    %v274 = vmul.f32 %v249, 1.442695
    %v275 = vpow.pop %v274
    %v276 = vmul.f32 %v250, 1.442695
    %v277 = vpow.pop %v276
    %v278 = vmul.f32 %v251, 1.442695
    %v279 = vpow.pop %v278
    %v280 = vmul.f32 %v252, 1.442695
    %v281 = vpow.pop %v280
    %v282 = vmul.f32 %v253, 1.442695
    %v283 = vpow.pop %v282
    %v284 = vmul.f32 %v254, 1.442695
    %v285 = vpow.pop %v284
    %v286 = vmul.f32 %v255, 1.442695
    %v287 = vpow.pop %v286
    %v288 = vld [vmem:[%s0] sm:$0xff]
    %v289 = vld [vmem:[%s0 + $0x8] sm:$0xff]
    %v290 = vld [vmem:[%s0 + $0x10] sm:$0xff]
    %v291 = vld [vmem:[%s0 + $0x18] sm:$0xff]
    %v292 = vld [vmem:[%s0 + $0x20] sm:$0xff]
    %v293 = vld [vmem:[%s0 + $0x28] sm:$0xff]
    %v294 = vld [vmem:[%s0 + $0x30] sm:$0xff]
    %v295 = vld [vmem:[%s0 + $0x38] sm:$0xff]
    %v296 = vld [vmem:[%s0 + $0x40] sm:$0xff]
    %v297 = vld [vmem:[%s0 + $0x48] sm:$0xff]
    %v298 = vld [vmem:[%s0 + $0x50] sm:$0xff]
    %v299 = vld [vmem:[%s0 + $0x58] sm:$0xff]
    %v300 = vld [vmem:[%s0 + $0x60] sm:$0xff]
    %v301 = vld [vmem:[%s0 + $0x68] sm:$0xff]
    %v302 = vld [vmem:[%s0 + $0x70] sm:$0xff]
    %v303 = vld [vmem:[%s0 + $0x78] sm:$0xff]
    %v304 = vmul.f32 %v162, %v288
    %v305 = vmul.f32 %v163, %v289
    %v306 = vmul.f32 %v164, %v290
    %v307 = vmul.f32 %v165, %v291
    %v308 = vmul.f32 %v166, %v292
    %v309 = vmul.f32 %v167, %v293
    %v310 = vmul.f32 %v168, %v294
    %v311 = vmul.f32 %v169, %v295
    %v312 = vmul.f32 %v170, %v296
    %v313 = vmul.f32 %v171, %v297
    %v314 = vmul.f32 %v172, %v298
    %v315 = vmul.f32 %v173, %v299
    %v316 = vmul.f32 %v174, %v300
    %v317 = vmul.f32 %v175, %v301
    %v318 = vmul.f32 %v176, %v302
    %v319 = vmul.f32 %v177, %v303
    %v320 = vsub.f32 1.0, %v162
    %v321 = vsub.f32 1.0, %v163
    %v322 = vsub.f32 1.0, %v164
    %v323 = vsub.f32 1.0, %v165
    %v324 = vsub.f32 1.0, %v166
    %v325 = vsub.f32 1.0, %v167
    %v326 = vsub.f32 1.0, %v168
    %v327 = vsub.f32 1.0, %v169
    %v328 = vsub.f32 1.0, %v170
    %v329 = vsub.f32 1.0, %v171
    %v330 = vsub.f32 1.0, %v172
    %v331 = vsub.f32 1.0, %v173
    %v332 = vsub.f32 1.0, %v174
    %v333 = vsub.f32 1.0, %v175
    %v334 = vsub.f32 1.0, %v176
    %v335 = vsub.f32 1.0, %v177
    %v336 = vld [vmem:[#allocation7] sm:$0xff]
    %v337 = vld [vmem:[#allocation7 + $0x8] sm:$0xff]
    %v338 = vld [vmem:[#allocation7 + $0x10] sm:$0xff]
    %v339 = vld [vmem:[#allocation7 + $0x18] sm:$0xff]
    %v340 = vld [vmem:[#allocation7 + $0x20] sm:$0xff]
    %v341 = vld [vmem:[#allocation7 + $0x28] sm:$0xff]
    %v342 = vld [vmem:[#allocation7 + $0x30] sm:$0xff]
    %v343 = vld [vmem:[#allocation7 + $0x38] sm:$0xff]
    %v344 = vld [vmem:[#allocation7 + $0x40] sm:$0xff]
    %v345 = vld [vmem:[#allocation7 + $0x48] sm:$0xff]
    %v346 = vld [vmem:[#allocation7 + $0x50] sm:$0xff]
    %v347 = vld [vmem:[#allocation7 + $0x58] sm:$0xff]
    %v348 = vld [vmem:[#allocation7 + $0x60] sm:$0xff]
    %v349 = vld [vmem:[#allocation7 + $0x68] sm:$0xff]
    %v350 = vld [vmem:[#allocation7 + $0x70] sm:$0xff]
    %v351 = vld [vmem:[#allocation7 + $0x78] sm:$0xff]
    %v352 = vmul.f32 %v257, %v336
    %v353 = vmul.f32 %v259, %v337
    %v354 = vmul.f32 %v261, %v338
    %v355 = vmul.f32 %v263, %v339
    %v356 = vmul.f32 %v265, %v340
    %v357 = vmul.f32 %v267, %v341
    %v358 = vmul.f32 %v269, %v342
    %v359 = vmul.f32 %v271, %v343
    %v360 = vmul.f32 %v273, %v344
    %v361 = vmul.f32 %v275, %v345
    %v362 = vmul.f32 %v277, %v346
    %v363 = vmul.f32 %v279, %v347
    %v364 = vmul.f32 %v281, %v348
    %v365 = vmul.f32 %v283, %v349
    %v366 = vmul.f32 %v285, %v350
    %v367 = vmul.f32 %v287, %v351
    %v368 = vsub.f32 1.0, %v257
    %v369 = vsub.f32 1.0, %v259
    %v370 = vsub.f32 1.0, %v261
    %v371 = vsub.f32 1.0, %v263
    %v372 = vsub.f32 1.0, %v265
    %v373 = vsub.f32 1.0, %v267
    %v374 = vsub.f32 1.0, %v269
    %v375 = vsub.f32 1.0, %v271
    %v376 = vsub.f32 1.0, %v273
    %v377 = vsub.f32 1.0, %v275
    %v378 = vsub.f32 1.0, %v277
    %v379 = vsub.f32 1.0, %v279
    %v380 = vsub.f32 1.0, %v281
    %v381 = vsub.f32 1.0, %v283
    %v382 = vsub.f32 1.0, %v285
    %v383 = vsub.f32 1.0, %v287
    %v384 = vld [vmem:[%s4] sm:$0x1]
    %v386 = vlaneseq
    %v387 = vshrl.u32 %v386, 7
    %v388 = vsub.s32 0, %v387
    %v389 = vrot.slane %v384, %v388
    %v391 = vmul.f32 %v368, %v389
    %v392 = vmul.f32 %v369, %v389
    %v393 = vmul.f32 %v370, %v389
    %v394 = vmul.f32 %v371, %v389
    %v395 = vmul.f32 %v372, %v389
    %v396 = vmul.f32 %v373, %v389
    %v397 = vmul.f32 %v374, %v389
    %v398 = vmul.f32 %v375, %v389
    %v399 = vmul.f32 %v376, %v389
    %v400 = vmul.f32 %v377, %v389
    %v401 = vmul.f32 %v378, %v389
    %v402 = vmul.f32 %v379, %v389
    %v403 = vmul.f32 %v380, %v389
    %v404 = vmul.f32 %v381, %v389
    %v405 = vmul.f32 %v382, %v389
    %v406 = vmul.f32 %v383, %v389
    %v407 = vadd.f32 %v352, %v391
    %v408 = vadd.f32 %v353, %v392
    %v409 = vadd.f32 %v354, %v393
    %v410 = vadd.f32 %v355, %v394
    %v411 = vadd.f32 %v356, %v395
    %v412 = vadd.f32 %v357, %v396
    %v413 = vadd.f32 %v358, %v397
    %v414 = vadd.f32 %v359, %v398
    %v415 = vadd.f32 %v360, %v399
    %v416 = vadd.f32 %v361, %v400
    %v417 = vadd.f32 %v362, %v401
    %v418 = vadd.f32 %v363, %v402
    %v419 = vadd.f32 %v364, %v403
    %v420 = vadd.f32 %v365, %v404
    %v421 = vadd.f32 %v366, %v405
    %v422 = vadd.f32 %v367, %v406
    %v423 = vmul.f32 %v320, %v407
    %v424 = vmul.f32 %v321, %v408
    %v425 = vmul.f32 %v322, %v409
    %v426 = vmul.f32 %v323, %v410
    %v427 = vmul.f32 %v324, %v411
    %v428 = vmul.f32 %v325, %v412
    %v429 = vmul.f32 %v326, %v413
    %v430 = vmul.f32 %v327, %v414
    %v431 = vmul.f32 %v328, %v415
    %v432 = vmul.f32 %v329, %v416
    %v433 = vmul.f32 %v330, %v417
    %v434 = vmul.f32 %v331, %v418
    %v435 = vmul.f32 %v332, %v419
    %v436 = vmul.f32 %v333, %v420
    %v437 = vmul.f32 %v334, %v421
    %v438 = vmul.f32 %v335, %v422
    %v439 = vadd.f32 %v304, %v423
    %v440 = vadd.f32 %v305, %v424
    %v441 = vadd.f32 %v306, %v425
    %v442 = vadd.f32 %v307, %v426
    %v443 = vadd.f32 %v308, %v427
    %v444 = vadd.f32 %v309, %v428
    %v445 = vadd.f32 %v310, %v429
    %v446 = vadd.f32 %v311, %v430
    %v447 = vadd.f32 %v312, %v431
    %v448 = vadd.f32 %v313, %v432
    %v449 = vadd.f32 %v314, %v433
    %v450 = vadd.f32 %v315, %v434
    %v451 = vadd.f32 %v316, %v435
    %v452 = vadd.f32 %v317, %v436
    %v453 = vadd.f32 %v318, %v437
    %v454 = vadd.f32 %v319, %v438
    %v455 = vld [vmem:[#allocation12] sm:$0xff]
    %v456 = vld [vmem:[#allocation12 + $0x8] sm:$0xff]
    %v457 = vld [vmem:[#allocation13] sm:$0x1]
    %v459 = vlaneseq
    %v460 = vshrl.u32 %v459, 7
    %v461 = vsub.s32 0, %v460
    %v462 = vrot.slane %v457, %v461
    %vm464 = vcmask 130048
    %v466 = vsel %vm464, %v146, 0
    %v469 = vsel %vm464, %v147, 0
    %v472 = vsel %vm464, %v148, 0
    %v475 = vsel %vm464, %v149, 0
    %v478 = vsel %vm464, %v150, 0
    %v481 = vsel %vm464, %v151, 0
    %v484 = vsel %vm464, %v152, 0
    %v487 = vsel %vm464, %v153, 0
    %v490 = vsel %vm464, %v154, 0
    %v493 = vsel %vm464, %v155, 0
    %v496 = vsel %vm464, %v156, 0
    %v499 = vsel %vm464, %v157, 0
    %v502 = vsel %vm464, %v158, 0
    %v505 = vsel %vm464, %v159, 0
    %v508 = vsel %vm464, %v160, 0
    %v511 = vsel %vm464, %v161, 0
    %513 = vmatprep.subr.mxu0 0.0
    %514 = vmatpush1.msra.mxu0 %v455
    %515 = vmatprep.subr.mxu0 0.0
    %516 = vmatpush1.msra.mxu0 %v456
    %517 = vmatprep.subr.mxu0 0.0
    %518 = vmatpush1.msra.mxu0 0.0
    %519 = vmatprep.subr.mxu0 0.0
    %520 = vmatpush1.msra.mxu0 0.0
    %521 = vmatprep.subr.mxu0 0.0
    %522 = vmatpush1.msra.mxu0 0.0
    %523 = vmatprep.subr.mxu0 0.0
    %524 = vmatpush1.msra.mxu0 0.0
    %525 = vmatprep.subr.mxu0 0.0
    %526 = vmatpush1.msra.mxu0 0.0
    %527 = vmatprep.subr.mxu0 0.0
    %528 = vmatpush1.msra.mxu0 0.0
    %529 = vmatprep.subr.mxu0 0.0
    %530 = vmatpush1.msra.mxu0 0.0
    %531 = vmatprep.subr.mxu0 0.0
    %532 = vmatpush1.msra.mxu0 0.0
    %533 = vmatprep.subr.mxu0 0.0
    %534 = vmatpush1.msra.mxu0 0.0
    %535 = vmatprep.subr.mxu0 0.0
    %536 = vmatpush1.msra.mxu0 0.0
    %537 = vmatprep.subr.mxu0 0.0
    %538 = vmatpush1.msra.mxu0 0.0
    %539 = vmatprep.subr.mxu0 0.0
    %540 = vmatpush1.msra.mxu0 0.0
    %541 = vmatprep.subr.mxu0 0.0
    %542 = vmatpush1.msra.mxu0 0.0
    %543 = vmatprep.subr.mxu0 0.0
    %544 = vmatpush1.msra.mxu0 0.0
    %545 = vmatprep.subr.mxu0 0.0
    %546 = vmatpush1.msra.mxu0 0.0
    %547 = vmatprep.subr.mxu0 0.0
    %548 = vmatpush1.msra.mxu0 0.0
    %549 = vmatprep.subr.mxu0 0.0
    %550 = vmatpush1.msra.mxu0 0.0
    %551 = vmatprep.subr.mxu0 0.0
    %552 = vmatpush1.msra.mxu0 0.0
    %553 = vmatprep.subr.mxu0 0.0
    %554 = vmatpush1.msra.mxu0 0.0
    %555 = vmatprep.subr.mxu0 0.0
    %556 = vmatpush1.msra.mxu0 0.0
    %557 = vmatprep.subr.mxu0 0.0
    %558 = vmatpush1.msra.mxu0 0.0
    %559 = vmatprep.subr.mxu0 0.0
    %560 = vmatpush1.msra.mxu0 0.0
    %561 = vmatprep.subr.mxu0 0.0
    %562 = vmatpush1.msra.mxu0 0.0
    %563 = vmatprep.subr.mxu0 0.0
    %564 = vmatpush1.msra.mxu0 0.0
    %565 = vmatprep.subr.mxu0 0.0
    %566 = vmatpush1.msra.mxu0 0.0
    %567 = vmatprep.subr.mxu0 0.0
    %568 = vmatpush1.msra.mxu0 0.0
    %569 = vmatprep.subr.mxu0 0.0
    %570 = vmatpush1.msra.mxu0 0.0
    %571 = vmatprep.subr.mxu0 0.0
    %572 = vmatpush1.msra.mxu0 0.0
    %573 = vmatprep.subr.mxu0 0.0
    %574 = vmatpush1.msra.mxu0 0.0
    %575 = vmatprep.subr.mxu0 0.0
    %576 = vmatpush1.msra.mxu0 0.0
    %577 = vmatprep.mubr.f32.mxu0 0.0
    %578 = vmatmul.mubr.f32.gmra.mrb[0].mxu0 %v466
    %v579 = vpop.f32.mrb[0].mxu0
    %v580 = vadd.f32 %v462, %v579
    %v581 = vpop.f32.mrb[0].mxu0
    %582 = vmatprep.mubr.f32.mxu0 0.0
    %583 = vmatmul.mubr.f32.gmra.mrb[0].mxu0 %v469
    %v584 = vpop.f32.mrb[0].mxu0
    %v585 = vadd.f32 %v462, %v584
    %v586 = vpop.f32.mrb[0].mxu0
    %587 = vmatprep.mubr.f32.mxu0 0.0
    %588 = vmatmul.mubr.f32.gmra.mrb[0].mxu0 %v472
    %v589 = vpop.f32.mrb[0].mxu0
    %v590 = vadd.f32 %v462, %v589
    %v591 = vpop.f32.mrb[0].mxu0
    %592 = vmatprep.mubr.f32.mxu0 0.0
    %593 = vmatmul.mubr.f32.gmra.mrb[0].mxu0 %v475
    %v594 = vpop.f32.mrb[0].mxu0
    %v595 = vadd.f32 %v462, %v594
    %v596 = vpop.f32.mrb[0].mxu0
    %597 = vmatprep.mubr.f32.mxu0 0.0
    %598 = vmatmul.mubr.f32.gmra.mrb[0].mxu0 %v478
    %v599 = vpop.f32.mrb[0].mxu0
    %v600 = vadd.f32 %v462, %v599
    %v601 = vpop.f32.mrb[0].mxu0
    %602 = vmatprep.mubr.f32.mxu0 0.0
    %603 = vmatmul.mubr.f32.gmra.mrb[0].mxu0 %v481
    %v604 = vpop.f32.mrb[0].mxu0
    %v605 = vadd.f32 %v462, %v604
    %v606 = vpop.f32.mrb[0].mxu0
    %607 = vmatprep.mubr.f32.mxu0 0.0
    %608 = vmatmul.mubr.f32.gmra.mrb[0].mxu0 %v484
    %v609 = vpop.f32.mrb[0].mxu0
    %v610 = vadd.f32 %v462, %v609
    %v611 = vpop.f32.mrb[0].mxu0
    %612 = vmatprep.mubr.f32.mxu0 0.0
    %613 = vmatmul.mubr.f32.gmra.mrb[0].mxu0 %v487
    %v614 = vpop.f32.mrb[0].mxu0
    %v615 = vadd.f32 %v462, %v614
    %v616 = vpop.f32.mrb[0].mxu0
    %617 = vmatprep.mubr.f32.mxu0 0.0
    %618 = vmatmul.mubr.f32.gmra.mrb[0].mxu0 %v490
    %v619 = vpop.f32.mrb[0].mxu0
    %v620 = vadd.f32 %v462, %v619
    %v621 = vpop.f32.mrb[0].mxu0
    %622 = vmatprep.mubr.f32.mxu0 0.0
    %623 = vmatmul.mubr.f32.gmra.mrb[0].mxu0 %v493
    %v624 = vpop.f32.mrb[0].mxu0
    %v625 = vadd.f32 %v462, %v624
    %v626 = vpop.f32.mrb[0].mxu0
    %627 = vmatprep.mubr.f32.mxu0 0.0
    %628 = vmatmul.mubr.f32.gmra.mrb[0].mxu0 %v496
    %v629 = vpop.f32.mrb[0].mxu0
    %v630 = vadd.f32 %v462, %v629
    %v631 = vpop.f32.mrb[0].mxu0
    %632 = vmatprep.mubr.f32.mxu0 0.0
    %633 = vmatmul.mubr.f32.gmra.mrb[0].mxu0 %v499
    %v634 = vpop.f32.mrb[0].mxu0
    %v635 = vadd.f32 %v462, %v634
    %v636 = vpop.f32.mrb[0].mxu0
    %637 = vmatprep.mubr.f32.mxu0 0.0
    %638 = vmatmul.mubr.f32.gmra.mrb[0].mxu0 %v502
    %v639 = vpop.f32.mrb[0].mxu0
    %v640 = vadd.f32 %v462, %v639
    %v641 = vpop.f32.mrb[0].mxu0
    %642 = vmatprep.mubr.f32.mxu0 0.0
    %643 = vmatmul.mubr.f32.gmra.mrb[0].mxu0 %v505
    %v644 = vpop.f32.mrb[0].mxu0
    %v645 = vadd.f32 %v462, %v644
    %v646 = vpop.f32.mrb[0].mxu0
    %647 = vmatprep.mubr.f32.mxu0 0.0
    %648 = vmatmul.mubr.f32.gmra.mrb[0].mxu0 %v508
    %v649 = vpop.f32.mrb[0].mxu0
    %v650 = vadd.f32 %v462, %v649
    %v651 = vpop.f32.mrb[0].mxu0
    %652 = vmatprep.mubr.f32.mxu0 0.0
    %653 = vmatmul.mubr.f32.gmra.mrb[0].mxu0 %v511
    %v654 = vpop.f32.mrb[0].mxu0
    %v655 = vadd.f32 %v462, %v654
    %v656 = vpop.f32.mrb[0].mxu0
    %657 = vdwg.mxu0
    %v658 = vmax.f32 %v580, 0.0
    %v659 = vmax.f32 %v585, 0.0
    %v660 = vmax.f32 %v590, 0.0
    %v661 = vmax.f32 %v595, 0.0
    %v662 = vmax.f32 %v600, 0.0
    %v663 = vmax.f32 %v605, 0.0
    %v664 = vmax.f32 %v610, 0.0
    %v665 = vmax.f32 %v615, 0.0
    %v666 = vmax.f32 %v620, 0.0
    %v667 = vmax.f32 %v625, 0.0
    %v668 = vmax.f32 %v630, 0.0
    %v669 = vmax.f32 %v635, 0.0
    %v670 = vmax.f32 %v640, 0.0
    %v671 = vmax.f32 %v645, 0.0
    %v672 = vmax.f32 %v650, 0.0
    %v673 = vmax.f32 %v655, 0.0
    %v674 = vsub.f32 0.0, %v658
    %v675 = vsub.f32 0.0, %v659
    %v676 = vsub.f32 0.0, %v660
    %v677 = vsub.f32 0.0, %v661
    %v678 = vsub.f32 0.0, %v662
    %v679 = vsub.f32 0.0, %v663
    %v680 = vsub.f32 0.0, %v664
    %v681 = vsub.f32 0.0, %v665
    %v682 = vsub.f32 0.0, %v666
    %v683 = vsub.f32 0.0, %v667
    %v684 = vsub.f32 0.0, %v668
    %v685 = vsub.f32 0.0, %v669
    %v686 = vsub.f32 0.0, %v670
    %v687 = vsub.f32 0.0, %v671
    %v688 = vsub.f32 0.0, %v672
    %v689 = vsub.f32 0.0, %v673
    %v690 = vmul.f32 %v674, 1.442695
    %v691 = vpow.pop %v690
    %v692 = vmul.f32 %v675, 1.442695
    %v693 = vpow.pop %v692
    %v694 = vmul.f32 %v676, 1.442695
    %v695 = vpow.pop %v694
    %v696 = vmul.f32 %v677, 1.442695
    %v697 = vpow.pop %v696
    %v698 = vmul.f32 %v678, 1.442695
    %v699 = vpow.pop %v698
    %v700 = vmul.f32 %v679, 1.442695
    %v701 = vpow.pop %v700
    %v702 = vmul.f32 %v680, 1.442695
    %v703 = vpow.pop %v702
    %v704 = vmul.f32 %v681, 1.442695
    %v705 = vpow.pop %v704
    %v706 = vmul.f32 %v682, 1.442695
    %v707 = vpow.pop %v706
    %v708 = vmul.f32 %v683, 1.442695
    %v709 = vpow.pop %v708
    %v710 = vmul.f32 %v684, 1.442695
    %v711 = vpow.pop %v710
    %v712 = vmul.f32 %v685, 1.442695
    %v713 = vpow.pop %v712
    %v714 = vmul.f32 %v686, 1.442695
    %v715 = vpow.pop %v714
    %v716 = vmul.f32 %v687, 1.442695
    %v717 = vpow.pop %v716
    %v718 = vmul.f32 %v688, 1.442695
    %v719 = vpow.pop %v718
    %v720 = vmul.f32 %v689, 1.442695
    %v721 = vpow.pop %v720
    %vm722 = vcmask 261120
    %723 = vst.msk [vmem:[#allocation3] sm:$0xff] %vm722, %v691
    %724 = vst.msk [vmem:[#allocation3 + $0x8] sm:$0xff] %vm722, %v693
    %725 = vst.msk [vmem:[#allocation3 + $0x10] sm:$0xff] %vm722, %v695
    %726 = vst.msk [vmem:[#allocation3 + $0x18] sm:$0xff] %vm722, %v697
    %727 = vst.msk [vmem:[#allocation3 + $0x20] sm:$0xff] %vm722, %v699
    %728 = vst.msk [vmem:[#allocation3 + $0x28] sm:$0xff] %vm722, %v701
    %729 = vst.msk [vmem:[#allocation3 + $0x30] sm:$0xff] %vm722, %v703
    %730 = vst.msk [vmem:[#allocation3 + $0x38] sm:$0xff] %vm722, %v705
    %731 = vst.msk [vmem:[#allocation3 + $0x40] sm:$0xff] %vm722, %v707
    %732 = vst.msk [vmem:[#allocation3 + $0x48] sm:$0xff] %vm722, %v709
    %733 = vst.msk [vmem:[#allocation3 + $0x50] sm:$0xff] %vm722, %v711
    %734 = vst.msk [vmem:[#allocation3 + $0x58] sm:$0xff] %vm722, %v713
    %735 = vst.msk [vmem:[#allocation3 + $0x60] sm:$0xff] %vm722, %v715
    %736 = vst.msk [vmem:[#allocation3 + $0x68] sm:$0xff] %vm722, %v717
    %737 = vst.msk [vmem:[#allocation3 + $0x70] sm:$0xff] %vm722, %v719
    %738 = vst.msk [vmem:[#allocation3 + $0x78] sm:$0xff] %vm722, %v721
    %v739 = vld [vmem:[%s9] sm:$0xff]
    %v740 = vld [vmem:[%s9 + $0x8] sm:$0xff]
    %v741 = vld [vmem:[%s10] sm:$0xff]
    %v742 = vld [vmem:[%s10 + $0x8] sm:$0xff]
    %v744 = vsel %vm464, %v162, 0
    %v747 = vsel %vm464, %v163, 0
    %v750 = vsel %vm464, %v164, 0
    %v753 = vsel %vm464, %v165, 0
    %v756 = vsel %vm464, %v166, 0
    %v759 = vsel %vm464, %v167, 0
    %v762 = vsel %vm464, %v168, 0
    %v765 = vsel %vm464, %v169, 0
    %v768 = vsel %vm464, %v170, 0
    %v771 = vsel %vm464, %v171, 0
    %v774 = vsel %vm464, %v172, 0
    %v777 = vsel %vm464, %v173, 0
    %v780 = vsel %vm464, %v174, 0
    %v783 = vsel %vm464, %v175, 0
    %v786 = vsel %vm464, %v176, 0
    %v789 = vsel %vm464, %v177, 0
    %791 = vmatprep.subr.mxu0 0.0
    %792 = vmatpush1.msra.mxu0 %v741
    %793 = vmatprep.subr.mxu0 0.0
    %794 = vmatpush1.msra.mxu0 %v742
    %795 = vmatprep.subr.mxu0 0.0
    %796 = vmatpush1.msra.mxu0 0.0
    %797 = vmatprep.subr.mxu0 0.0
    %798 = vmatpush1.msra.mxu0 0.0
    %799 = vmatprep.subr.mxu0 0.0
    %800 = vmatpush1.msra.mxu0 0.0
    %801 = vmatprep.subr.mxu0 0.0
    %802 = vmatpush1.msra.mxu0 0.0
    %803 = vmatprep.subr.mxu0 0.0
    %804 = vmatpush1.msra.mxu0 0.0
    %805 = vmatprep.subr.mxu0 0.0
    %806 = vmatpush1.msra.mxu0 0.0
    %807 = vmatprep.subr.mxu0 0.0
    %808 = vmatpush1.msra.mxu0 0.0
    %809 = vmatprep.subr.mxu0 0.0
    %810 = vmatpush1.msra.mxu0 0.0
    %811 = vmatprep.subr.mxu0 0.0
    %812 = vmatpush1.msra.mxu0 0.0
    %813 = vmatprep.subr.mxu0 0.0
    %814 = vmatpush1.msra.mxu0 0.0
    %815 = vmatprep.subr.mxu0 0.0
    %816 = vmatpush1.msra.mxu0 0.0
    %817 = vmatprep.subr.mxu0 0.0
    %818 = vmatpush1.msra.mxu0 0.0
    %819 = vmatprep.subr.mxu0 0.0
    %820 = vmatpush1.msra.mxu0 0.0
    %821 = vmatprep.subr.mxu0 0.0
    %822 = vmatpush1.msra.mxu0 0.0
    %823 = vmatprep.subr.mxu0 0.0
    %824 = vmatpush1.msra.mxu0 0.0
    %825 = vmatprep.subr.mxu0 0.0
    %826 = vmatpush1.msra.mxu0 0.0
    %827 = vmatprep.subr.mxu0 0.0
    %828 = vmatpush1.msra.mxu0 0.0
    %829 = vmatprep.subr.mxu0 0.0
    %830 = vmatpush1.msra.mxu0 0.0
    %831 = vmatprep.subr.mxu0 0.0
    %832 = vmatpush1.msra.mxu0 0.0
    %833 = vmatprep.subr.mxu0 0.0
    %834 = vmatpush1.msra.mxu0 0.0
    %835 = vmatprep.subr.mxu0 0.0
    %836 = vmatpush1.msra.mxu0 0.0
    %837 = vmatprep.subr.mxu0 0.0
    %838 = vmatpush1.msra.mxu0 0.0
    %839 = vmatprep.subr.mxu0 0.0
    %840 = vmatpush1.msra.mxu0 0.0
    %841 = vmatprep.subr.mxu0 0.0
    %842 = vmatpush1.msra.mxu0 0.0
    %843 = vmatprep.subr.mxu0 0.0
    %844 = vmatpush1.msra.mxu0 0.0
    %845 = vmatprep.subr.mxu0 0.0
    %846 = vmatpush1.msra.mxu0 0.0
    %847 = vmatprep.subr.mxu0 0.0
    %848 = vmatpush1.msra.mxu0 0.0
    %849 = vmatprep.subr.mxu0 0.0
    %850 = vmatpush1.msra.mxu0 0.0
    %851 = vmatprep.subr.mxu0 0.0
    %852 = vmatpush1.msra.mxu0 0.0
    %853 = vmatprep.subr.mxu0 0.0
    %854 = vmatpush1.msra.mxu0 0.0
    %855 = vmatprep.mubr.f32.mxu0 0.0
    %856 = vmatmul.mubr.f32.gmra.mrb[0].mxu0 %v744
    %v857 = vpop.f32.mrb[0].mxu0
    %v858 = vadd.f32 0.0, %v857
    %v859 = vpop.f32.mrb[0].mxu0
    %860 = vmatprep.mubr.f32.mxu0 0.0
    %861 = vmatmul.mubr.f32.gmra.mrb[0].mxu0 %v747
    %v862 = vpop.f32.mrb[0].mxu0
    %v863 = vadd.f32 0.0, %v862
    %v864 = vpop.f32.mrb[0].mxu0
    %865 = vmatprep.mubr.f32.mxu0 0.0
    %866 = vmatmul.mubr.f32.gmra.mrb[0].mxu0 %v750
    %v867 = vpop.f32.mrb[0].mxu0
    %v868 = vadd.f32 0.0, %v867
    %v869 = vpop.f32.mrb[0].mxu0
    %870 = vmatprep.mubr.f32.mxu0 0.0
    %871 = vmatmul.mubr.f32.gmra.mrb[0].mxu0 %v753
    %v872 = vpop.f32.mrb[0].mxu0
    %v873 = vadd.f32 0.0, %v872
    %v874 = vpop.f32.mrb[0].mxu0
    %875 = vmatprep.mubr.f32.mxu0 0.0
    %876 = vmatmul.mubr.f32.gmra.mrb[0].mxu0 %v756
    %v877 = vpop.f32.mrb[0].mxu0
    %v878 = vadd.f32 0.0, %v877
    %v879 = vpop.f32.mrb[0].mxu0
    %880 = vmatprep.mubr.f32.mxu0 0.0
    %881 = vmatmul.mubr.f32.gmra.mrb[0].mxu0 %v759
    %v882 = vpop.f32.mrb[0].mxu0
    %v883 = vadd.f32 0.0, %v882
    %v884 = vpop.f32.mrb[0].mxu0
    %885 = vmatprep.mubr.f32.mxu0 0.0
    %886 = vmatmul.mubr.f32.gmra.mrb[0].mxu0 %v762
    %v887 = vpop.f32.mrb[0].mxu0
    %v888 = vadd.f32 0.0, %v887
    %v889 = vpop.f32.mrb[0].mxu0
    %890 = vmatprep.mubr.f32.mxu0 0.0
    %891 = vmatmul.mubr.f32.gmra.mrb[0].mxu0 %v765
    %v892 = vpop.f32.mrb[0].mxu0
    %v893 = vadd.f32 0.0, %v892
    %v894 = vpop.f32.mrb[0].mxu0
    %895 = vmatprep.mubr.f32.mxu0 0.0
    %896 = vmatmul.mubr.f32.gmra.mrb[0].mxu0 %v768
    %v897 = vpop.f32.mrb[0].mxu0
    %v898 = vadd.f32 0.0, %v897
    %v899 = vpop.f32.mrb[0].mxu0
    %900 = vmatprep.mubr.f32.mxu0 0.0
    %901 = vmatmul.mubr.f32.gmra.mrb[0].mxu0 %v771
    %v902 = vpop.f32.mrb[0].mxu0
    %v903 = vadd.f32 0.0, %v902
    %v904 = vpop.f32.mrb[0].mxu0
    %905 = vmatprep.mubr.f32.mxu0 0.0
    %906 = vmatmul.mubr.f32.gmra.mrb[0].mxu0 %v774
    %v907 = vpop.f32.mrb[0].mxu0
    %v908 = vadd.f32 0.0, %v907
    %v909 = vpop.f32.mrb[0].mxu0
    %910 = vmatprep.mubr.f32.mxu0 0.0
    %911 = vmatmul.mubr.f32.gmra.mrb[0].mxu0 %v777
    %v912 = vpop.f32.mrb[0].mxu0
    %v913 = vadd.f32 0.0, %v912
    %v914 = vpop.f32.mrb[0].mxu0
    %915 = vmatprep.mubr.f32.mxu0 0.0
    %916 = vmatmul.mubr.f32.gmra.mrb[0].mxu0 %v780
    %v917 = vpop.f32.mrb[0].mxu0
    %v918 = vadd.f32 0.0, %v917
    %v919 = vpop.f32.mrb[0].mxu0
    %920 = vmatprep.mubr.f32.mxu0 0.0
    %921 = vmatmul.mubr.f32.gmra.mrb[0].mxu0 %v783
    %v922 = vpop.f32.mrb[0].mxu0
    %v923 = vadd.f32 0.0, %v922
    %v924 = vpop.f32.mrb[0].mxu0
    %925 = vmatprep.mubr.f32.mxu0 0.0
    %926 = vmatmul.mubr.f32.gmra.mrb[0].mxu0 %v786
    %v927 = vpop.f32.mrb[0].mxu0
    %v928 = vadd.f32 0.0, %v927
    %v929 = vpop.f32.mrb[0].mxu0
    %930 = vmatprep.mubr.f32.mxu0 0.0
    %931 = vmatmul.mubr.f32.gmra.mrb[0].mxu0 %v789
    %v932 = vpop.f32.mrb[0].mxu0
    %v933 = vadd.f32 0.0, %v932
    %v934 = vpop.f32.mrb[0].mxu0
    %935 = vdwg.mxu0
    %v937 = vsel %vm464, %v439, 0
    %v940 = vsel %vm464, %v440, 0
    %v943 = vsel %vm464, %v441, 0
    %v946 = vsel %vm464, %v442, 0
    %v949 = vsel %vm464, %v443, 0
    %v952 = vsel %vm464, %v444, 0
    %v955 = vsel %vm464, %v445, 0
    %v958 = vsel %vm464, %v446, 0
    %v961 = vsel %vm464, %v447, 0
    %v964 = vsel %vm464, %v448, 0
    %v967 = vsel %vm464, %v449, 0
    %v970 = vsel %vm464, %v450, 0
    %v973 = vsel %vm464, %v451, 0
    %v976 = vsel %vm464, %v452, 0
    %v979 = vsel %vm464, %v453, 0
    %v982 = vsel %vm464, %v454, 0
    %984 = vmatprep.subr.mxu0 0.0
    %985 = vmatpush1.msra.mxu0 %v739
    %986 = vmatprep.subr.mxu0 0.0
    %987 = vmatpush1.msra.mxu0 %v740
    %988 = vmatprep.subr.mxu0 0.0
    %989 = vmatpush1.msra.mxu0 0.0
    %990 = vmatprep.subr.mxu0 0.0
    %991 = vmatpush1.msra.mxu0 0.0
    %992 = vmatprep.subr.mxu0 0.0
    %993 = vmatpush1.msra.mxu0 0.0
    %994 = vmatprep.subr.mxu0 0.0
    %995 = vmatpush1.msra.mxu0 0.0
    %996 = vmatprep.subr.mxu0 0.0
    %997 = vmatpush1.msra.mxu0 0.0
    %998 = vmatprep.subr.mxu0 0.0
    %999 = vmatpush1.msra.mxu0 0.0
    %1000 = vmatprep.subr.mxu0 0.0
    %1001 = vmatpush1.msra.mxu0 0.0
    %1002 = vmatprep.subr.mxu0 0.0
    %1003 = vmatpush1.msra.mxu0 0.0
    %1004 = vmatprep.subr.mxu0 0.0
    %1005 = vmatpush1.msra.mxu0 0.0
    %1006 = vmatprep.subr.mxu0 0.0
    %1007 = vmatpush1.msra.mxu0 0.0
    %1008 = vmatprep.subr.mxu0 0.0
    %1009 = vmatpush1.msra.mxu0 0.0
    %1010 = vmatprep.subr.mxu0 0.0
    %1011 = vmatpush1.msra.mxu0 0.0
    %1012 = vmatprep.subr.mxu0 0.0
    %1013 = vmatpush1.msra.mxu0 0.0
    %1014 = vmatprep.subr.mxu0 0.0
    %1015 = vmatpush1.msra.mxu0 0.0
    %1016 = vmatprep.subr.mxu0 0.0
    %1017 = vmatpush1.msra.mxu0 0.0
    %1018 = vmatprep.subr.mxu0 0.0
    %1019 = vmatpush1.msra.mxu0 0.0
    %1020 = vmatprep.subr.mxu0 0.0
    %1021 = vmatpush1.msra.mxu0 0.0
    %1022 = vmatprep.subr.mxu0 0.0
    %1023 = vmatpush1.msra.mxu0 0.0
    %1024 = vmatprep.subr.mxu0 0.0
    %1025 = vmatpush1.msra.mxu0 0.0
    %1026 = vmatprep.subr.mxu0 0.0
    %1027 = vmatpush1.msra.mxu0 0.0
    %1028 = vmatprep.subr.mxu0 0.0
    %1029 = vmatpush1.msra.mxu0 0.0
    %1030 = vmatprep.subr.mxu0 0.0
    %1031 = vmatpush1.msra.mxu0 0.0
    %1032 = vmatprep.subr.mxu0 0.0
    %1033 = vmatpush1.msra.mxu0 0.0
    %1034 = vmatprep.subr.mxu0 0.0
    %1035 = vmatpush1.msra.mxu0 0.0
    %1036 = vmatprep.subr.mxu0 0.0
    %1037 = vmatpush1.msra.mxu0 0.0
    %1038 = vmatprep.subr.mxu0 0.0
    %1039 = vmatpush1.msra.mxu0 0.0
    %1040 = vmatprep.subr.mxu0 0.0
    %1041 = vmatpush1.msra.mxu0 0.0
    %1042 = vmatprep.subr.mxu0 0.0
    %1043 = vmatpush1.msra.mxu0 0.0
    %1044 = vmatprep.subr.mxu0 0.0
    %1045 = vmatpush1.msra.mxu0 0.0
    %1046 = vmatprep.subr.mxu0 0.0
    %1047 = vmatpush1.msra.mxu0 0.0
    %1048 = vmatprep.mubr.f32.mxu0 0.0
    %1049 = vmatmul.mubr.f32.gmra.mrb[0].mxu0 %v937
    %v1050 = vpop.f32.mrb[0].mxu0
    %v1051 = vadd.f32 %v858, %v1050
    %v1052 = vpop.f32.mrb[0].mxu0
    %1053 = vmatprep.mubr.f32.mxu0 0.0
    %1054 = vmatmul.mubr.f32.gmra.mrb[0].mxu0 %v940
    %v1055 = vpop.f32.mrb[0].mxu0
    %v1056 = vadd.f32 %v863, %v1055
    %v1057 = vpop.f32.mrb[0].mxu0
    %1058 = vmatprep.mubr.f32.mxu0 0.0
    %1059 = vmatmul.mubr.f32.gmra.mrb[0].mxu0 %v943
    %v1060 = vpop.f32.mrb[0].mxu0
    %v1061 = vadd.f32 %v868, %v1060
    %v1062 = vpop.f32.mrb[0].mxu0
    %1063 = vmatprep.mubr.f32.mxu0 0.0
    %1064 = vmatmul.mubr.f32.gmra.mrb[0].mxu0 %v946
    %v1065 = vpop.f32.mrb[0].mxu0
    %v1066 = vadd.f32 %v873, %v1065
    %v1067 = vpop.f32.mrb[0].mxu0
    %1068 = vmatprep.mubr.f32.mxu0 0.0
    %1069 = vmatmul.mubr.f32.gmra.mrb[0].mxu0 %v949
    %v1070 = vpop.f32.mrb[0].mxu0
    %v1071 = vadd.f32 %v878, %v1070
    %v1072 = vpop.f32.mrb[0].mxu0
    %1073 = vmatprep.mubr.f32.mxu0 0.0
    %1074 = vmatmul.mubr.f32.gmra.mrb[0].mxu0 %v952
    %v1075 = vpop.f32.mrb[0].mxu0
    %v1076 = vadd.f32 %v883, %v1075
    %v1077 = vpop.f32.mrb[0].mxu0
    %1078 = vmatprep.mubr.f32.mxu0 0.0
    %1079 = vmatmul.mubr.f32.gmra.mrb[0].mxu0 %v955
    %v1080 = vpop.f32.mrb[0].mxu0
    %v1081 = vadd.f32 %v888, %v1080
    %v1082 = vpop.f32.mrb[0].mxu0
    %1083 = vmatprep.mubr.f32.mxu0 0.0
    %1084 = vmatmul.mubr.f32.gmra.mrb[0].mxu0 %v958
    %v1085 = vpop.f32.mrb[0].mxu0
    %v1086 = vadd.f32 %v893, %v1085
    %v1087 = vpop.f32.mrb[0].mxu0
    %1088 = vmatprep.mubr.f32.mxu0 0.0
    %1089 = vmatmul.mubr.f32.gmra.mrb[0].mxu0 %v961
    %v1090 = vpop.f32.mrb[0].mxu0
    %v1091 = vadd.f32 %v898, %v1090
    %v1092 = vpop.f32.mrb[0].mxu0
    %1093 = vmatprep.mubr.f32.mxu0 0.0
    %1094 = vmatmul.mubr.f32.gmra.mrb[0].mxu0 %v964
    %v1095 = vpop.f32.mrb[0].mxu0
    %v1096 = vadd.f32 %v903, %v1095
    %v1097 = vpop.f32.mrb[0].mxu0
    %1098 = vmatprep.mubr.f32.mxu0 0.0
    %1099 = vmatmul.mubr.f32.gmra.mrb[0].mxu0 %v967
    %v1100 = vpop.f32.mrb[0].mxu0
    %v1101 = vadd.f32 %v908, %v1100
    %v1102 = vpop.f32.mrb[0].mxu0
    %1103 = vmatprep.mubr.f32.mxu0 0.0
    %1104 = vmatmul.mubr.f32.gmra.mrb[0].mxu0 %v970
    %v1105 = vpop.f32.mrb[0].mxu0
    %v1106 = vadd.f32 %v913, %v1105
    %v1107 = vpop.f32.mrb[0].mxu0
    %1108 = vmatprep.mubr.f32.mxu0 0.0
    %1109 = vmatmul.mubr.f32.gmra.mrb[0].mxu0 %v973
    %v1110 = vpop.f32.mrb[0].mxu0
    %v1111 = vadd.f32 %v918, %v1110
    %v1112 = vpop.f32.mrb[0].mxu0
    %1113 = vmatprep.mubr.f32.mxu0 0.0
    %1114 = vmatmul.mubr.f32.gmra.mrb[0].mxu0 %v976
    %v1115 = vpop.f32.mrb[0].mxu0
    %v1116 = vadd.f32 %v923, %v1115
    %v1117 = vpop.f32.mrb[0].mxu0
    %1118 = vmatprep.mubr.f32.mxu0 0.0
    %1119 = vmatmul.mubr.f32.gmra.mrb[0].mxu0 %v979
    %v1120 = vpop.f32.mrb[0].mxu0
    %v1121 = vadd.f32 %v928, %v1120
    %v1122 = vpop.f32.mrb[0].mxu0
    %1123 = vmatprep.mubr.f32.mxu0 0.0
    %1124 = vmatmul.mubr.f32.gmra.mrb[0].mxu0 %v982
    %v1125 = vpop.f32.mrb[0].mxu0
    %v1126 = vadd.f32 %v933, %v1125
    %v1127 = vpop.f32.mrb[0].mxu0
    %1128 = vdwg.mxu0
    %v1129 = vld [vmem:[%s11] sm:$0x1]
    %v1131 = vlaneseq
    %v1132 = vshrl.u32 %v1131, 7
    %v1133 = vsub.s32 0, %v1132
    %v1134 = vrot.slane %v1129, %v1133
    %v1136 = vadd.f32 %v1051, %v1134
    %v1137 = vadd.f32 %v1056, %v1134
    %v1138 = vadd.f32 %v1061, %v1134
    %v1139 = vadd.f32 %v1066, %v1134
    %v1140 = vadd.f32 %v1071, %v1134
    %v1141 = vadd.f32 %v1076, %v1134
    %v1142 = vadd.f32 %v1081, %v1134
    %v1143 = vadd.f32 %v1086, %v1134
    %v1144 = vadd.f32 %v1091, %v1134
    %v1145 = vadd.f32 %v1096, %v1134
    %v1146 = vadd.f32 %v1101, %v1134
    %v1147 = vadd.f32 %v1106, %v1134
    %v1148 = vadd.f32 %v1111, %v1134
    %v1149 = vadd.f32 %v1116, %v1134
    %v1150 = vadd.f32 %v1121, %v1134
    %v1151 = vadd.f32 %v1126, %v1134
    %vm1152 = vcmask 785408
    %1153 = vst.msk [vmem:[#allocation2] sm:$0xff] %vm1152, %v1136
    %1154 = vst.msk [vmem:[#allocation2 + $0x8] sm:$0xff] %vm1152, %v1137
    %1155 = vst.msk [vmem:[#allocation2 + $0x10] sm:$0xff] %vm1152, %v1138
    %1156 = vst.msk [vmem:[#allocation2 + $0x18] sm:$0xff] %vm1152, %v1139
    %1157 = vst.msk [vmem:[#allocation2 + $0x20] sm:$0xff] %vm1152, %v1140
    %1158 = vst.msk [vmem:[#allocation2 + $0x28] sm:$0xff] %vm1152, %v1141
    %1159 = vst.msk [vmem:[#allocation2 + $0x30] sm:$0xff] %vm1152, %v1142
    %1160 = vst.msk [vmem:[#allocation2 + $0x38] sm:$0xff] %vm1152, %v1143
    %1161 = vst.msk [vmem:[#allocation2 + $0x40] sm:$0xff] %vm1152, %v1144
    %1162 = vst.msk [vmem:[#allocation2 + $0x48] sm:$0xff] %vm1152, %v1145
    %1163 = vst.msk [vmem:[#allocation2 + $0x50] sm:$0xff] %vm1152, %v1146
    %1164 = vst.msk [vmem:[#allocation2 + $0x58] sm:$0xff] %vm1152, %v1147
    %1165 = vst.msk [vmem:[#allocation2 + $0x60] sm:$0xff] %vm1152, %v1148
    %1166 = vst.msk [vmem:[#allocation2 + $0x68] sm:$0xff] %vm1152, %v1149
    %1167 = vst.msk [vmem:[#allocation2 + $0x70] sm:$0xff] %vm1152, %v1150
    %1168 = vst.msk [vmem:[#allocation2 + $0x78] sm:$0xff] %vm1152, %v1151
    %v1169 = vld [vmem:[%s12] sm:$0xff]
    %v1170 = vld [vmem:[%s12 + $0x8] sm:$0xff]
    %v1171 = vld [vmem:[%s12 + $0x10] sm:$0xff]
    %v1172 = vld [vmem:[%s12 + $0x18] sm:$0xff]
    %v1173 = vld [vmem:[#allocation15] sm:$0xff]
    %v1174 = vld [vmem:[#allocation15 + $0x8] sm:$0xff]
    %v1175 = vld [vmem:[#allocation15 + $0x10] sm:$0xff]
    %v1176 = vld [vmem:[#allocation15 + $0x18] sm:$0xff]
    %v1177 = vld [vmem:[#allocation17] sm:$0xff]
    loop: start=0, step=1, limit=8
    $region90: #{grud_forward_time_major.1} parent=1 // loop_pre_header
      _
    $region91: #{grud_forward_time_major.1} parent=1 // loop_header
      %s1179 = sphi 0, %s1183
      %p1180 = scmp.ge.s32.totalorder %s1179, 8
      %v1184 = vphi %v1177, %v1547
    $region92: #{grud_forward_time_major.1} parent=1 // loop_header_branch
      %1182 = sbr.rel (%p1180) target = $region96
    $region93: #{grud_forward_time_major.1} parent=1 // loop_body
      %s1185 = smul.u32 %s1179, 2
      %s1186 = sadd.s32 %s1185, 1
      %s1187 = smul.u32 %s1179, 16
      %s1188 = scalar_lea.vmem [#allocation3], %s1187
      %v1189 = vld [vmem:[%s1188] sm:$0xff]
      %s1190 = scalar_lea.vmem [#allocation2], %s1187
      %v1191 = vld [vmem:[%s1190] sm:$0xff]
      %v1192 = vmul.f32 %v1189, %v1184
      %v1194 = vsel %vm722, %v1192, 0
      %1196 = vmatprep.subr.mxu0 0.0
      %1197 = vmatpush1.msra.mxu0 %v1169
      %1198 = vmatprep.subr.mxu0 0.0
      %1199 = vmatpush1.msra.mxu0 %v1170
      %1200 = vmatprep.subr.mxu0 0.0
      %1201 = vmatpush1.msra.mxu0 %v1171
      %1202 = vmatprep.subr.mxu0 0.0
      %1203 = vmatpush1.msra.mxu0 %v1172
      %1204 = vmatprep.subr.mxu0 0.0
      %1205 = vmatpush1.msra.mxu0 0.0
      %1206 = vmatprep.subr.mxu0 0.0
      %1207 = vmatpush1.msra.mxu0 0.0
      %1208 = vmatprep.subr.mxu0 0.0
      %1209 = vmatpush1.msra.mxu0 0.0
      %1210 = vmatprep.subr.mxu0 0.0
      %1211 = vmatpush1.msra.mxu0 0.0
      %1212 = vmatprep.subr.mxu0 0.0
      %1213 = vmatpush1.msra.mxu0 0.0
      %1214 = vmatprep.subr.mxu0 0.0
      %1215 = vmatpush1.msra.mxu0 0.0
      %1216 = vmatprep.subr.mxu0 0.0
      %1217 = vmatpush1.msra.mxu0 0.0
      %1218 = vmatprep.subr.mxu0 0.0
      %1219 = vmatpush1.msra.mxu0 0.0
      %1220 = vmatprep.subr.mxu0 0.0
      %1221 = vmatpush1.msra.mxu0 0.0
      %1222 = vmatprep.subr.mxu0 0.0
      %1223 = vmatpush1.msra.mxu0 0.0
      %1224 = vmatprep.subr.mxu0 0.0
      %1225 = vmatpush1.msra.mxu0 0.0
      %1226 = vmatprep.subr.mxu0 0.0
      %1227 = vmatpush1.msra.mxu0 0.0
      %1228 = vmatprep.subr.mxu0 0.0
      %1229 = vmatpush1.msra.mxu0 0.0
      %1230 = vmatprep.subr.mxu0 0.0
      %1231 = vmatpush1.msra.mxu0 0.0
      %1232 = vmatprep.subr.mxu0 0.0
      %1233 = vmatpush1.msra.mxu0 0.0
      %1234 = vmatprep.subr.mxu0 0.0
      %1235 = vmatpush1.msra.mxu0 0.0
      %1236 = vmatprep.subr.mxu0 0.0
      %1237 = vmatpush1.msra.mxu0 0.0
      %1238 = vmatprep.subr.mxu0 0.0
      %1239 = vmatpush1.msra.mxu0 0.0
      %1240 = vmatprep.subr.mxu0 0.0
      %1241 = vmatpush1.msra.mxu0 0.0
      %1242 = vmatprep.subr.mxu0 0.0
      %1243 = vmatpush1.msra.mxu0 0.0
      %1244 = vmatprep.subr.mxu0 0.0
      %1245 = vmatpush1.msra.mxu0 0.0
      %1246 = vmatprep.subr.mxu0 0.0
      %1247 = vmatpush1.msra.mxu0 0.0
      %1248 = vmatprep.subr.mxu0 0.0
      %1249 = vmatpush1.msra.mxu0 0.0
      %1250 = vmatprep.subr.mxu0 0.0
      %1251 = vmatpush1.msra.mxu0 0.0
      %1252 = vmatprep.subr.mxu0 0.0
      %1253 = vmatpush1.msra.mxu0 0.0
      %1254 = vmatprep.subr.mxu0 0.0
      %1255 = vmatpush1.msra.mxu0 0.0
      %1256 = vmatprep.subr.mxu0 0.0
      %1257 = vmatpush1.msra.mxu0 0.0
      %1258 = vmatprep.subr.mxu0 0.0
      %1259 = vmatpush1.msra.mxu0 0.0
      %1260 = vmatprep.mubr.f32.mxu0 0.0
      %1261 = vmatmul.mubr.f32.gmra.mrb[0].mxu0 %v1194
      %v1262 = vpop.f32.mrb[0].mxu0
      %v1263 = vadd.f32 0.0, %v1262
      %v1264 = vpop.f32.mrb[0].mxu0
      %1265 = vdwg.mxu0
      %v1266 = vadd.f32 %v1191, %v1263
      %v1267 = vxor.u32 %v1266, 2147483648
      %v1268 = vmul.f32 %v1267, 1.442695
      %v1269 = vpow.pop %v1268
      %v1270 = vadd.f32 %v1269, 1.0
      %v1271 = vrcp.pop %v1270
      %v1272 = vmul.f32 1.0, %v1271
      %1273 = vrot.lane.b32.xlu0 %v1192, 32
      %v1274 = vpop.permute.xlu0 %1273
      %v1276 = vmul.f32 %v1272, %v1274
      %1278 = vrot.lane.b32.xlu0 %v1276, 96
      %v1279 = vpop.permute.xlu0 %1278
      %v1280 = vsel %vm722, %v1279, 0
      %1282 = vmatprep.subr.mxu0 0.0
      %1283 = vmatpush1.msra.mxu0 %v1173
      %1284 = vmatprep.subr.mxu0 0.0
      %1285 = vmatpush1.msra.mxu0 %v1174
      %1286 = vmatprep.subr.mxu0 0.0
      %1287 = vmatpush1.msra.mxu0 %v1175
      %1288 = vmatprep.subr.mxu0 0.0
      %1289 = vmatpush1.msra.mxu0 %v1176
      %1290 = vmatprep.subr.mxu0 0.0
      %1291 = vmatpush1.msra.mxu0 0.0
      %1292 = vmatprep.subr.mxu0 0.0
      %1293 = vmatpush1.msra.mxu0 0.0
      %1294 = vmatprep.subr.mxu0 0.0
      %1295 = vmatpush1.msra.mxu0 0.0
      %1296 = vmatprep.subr.mxu0 0.0
      %1297 = vmatpush1.msra.mxu0 0.0
      %1298 = vmatprep.subr.mxu0 0.0
      %1299 = vmatpush1.msra.mxu0 0.0
      %1300 = vmatprep.subr.mxu0 0.0
      %1301 = vmatpush1.msra.mxu0 0.0
      %1302 = vmatprep.subr.mxu0 0.0
      %1303 = vmatpush1.msra.mxu0 0.0
      %1304 = vmatprep.subr.mxu0 0.0
      %1305 = vmatpush1.msra.mxu0 0.0
      %1306 = vmatprep.subr.mxu0 0.0
      %1307 = vmatpush1.msra.mxu0 0.0
      %1308 = vmatprep.subr.mxu0 0.0
      %1309 = vmatpush1.msra.mxu0 0.0
      %1310 = vmatprep.subr.mxu0 0.0
      %1311 = vmatpush1.msra.mxu0 0.0
      %1312 = vmatprep.subr.mxu0 0.0
      %1313 = vmatpush1.msra.mxu0 0.0
      %1314 = vmatprep.subr.mxu0 0.0
      %1315 = vmatpush1.msra.mxu0 0.0
      %1316 = vmatprep.subr.mxu0 0.0
      %1317 = vmatpush1.msra.mxu0 0.0
      %1318 = vmatprep.subr.mxu0 0.0
      %1319 = vmatpush1.msra.mxu0 0.0
      %1320 = vmatprep.subr.mxu0 0.0
      %1321 = vmatpush1.msra.mxu0 0.0
      %1322 = vmatprep.subr.mxu0 0.0
      %1323 = vmatpush1.msra.mxu0 0.0
      %1324 = vmatprep.subr.mxu0 0.0
      %1325 = vmatpush1.msra.mxu0 0.0
      %1326 = vmatprep.subr.mxu0 0.0
      %1327 = vmatpush1.msra.mxu0 0.0
      %1328 = vmatprep.subr.mxu0 0.0
      %1329 = vmatpush1.msra.mxu0 0.0
      %1330 = vmatprep.subr.mxu0 0.0
      %1331 = vmatpush1.msra.mxu0 0.0
      %1332 = vmatprep.subr.mxu0 0.0
      %1333 = vmatpush1.msra.mxu0 0.0
      %1334 = vmatprep.subr.mxu0 0.0
      %1335 = vmatpush1.msra.mxu0 0.0
      %1336 = vmatprep.subr.mxu0 0.0
      %1337 = vmatpush1.msra.mxu0 0.0
      %1338 = vmatprep.subr.mxu0 0.0
      %1339 = vmatpush1.msra.mxu0 0.0
      %1340 = vmatprep.subr.mxu0 0.0
      %1341 = vmatpush1.msra.mxu0 0.0
      %1342 = vmatprep.subr.mxu0 0.0
      %1343 = vmatpush1.msra.mxu0 0.0
      %1344 = vmatprep.subr.mxu0 0.0
      %1345 = vmatpush1.msra.mxu0 0.0
      %1346 = vmatprep.mubr.f32.mxu0 0.0
      %1347 = vmatmul.mubr.f32.gmra.mrb[0].mxu0 %v1280
      %v1348 = vpop.f32.mrb[0].mxu0
      %v1349 = vadd.f32 0.0, %v1348
      %v1350 = vpop.f32.mrb[0].mxu0
      %1351 = vdwg.mxu0
      %1353 = vrot.lane.b32.xlu0 %v1349, 64
      %v1354 = vpop.permute.xlu0 %1353
      %v1356 = vadd.f32 %v1191, %v1354
      %v1357 = vtanh.pop %v1356
      %v1358 = vsub.f32 1.0, %v1272
      %v1359 = vmul.f32 %v1358, %v1192
      %1361 = vrot.lane.b32.xlu0 %v1357, 64
      %v1362 = vpop.permute.xlu0 %1361
      %v1364 = vmul.f32 %v1272, %v1362
      %v1365 = vadd.f32 %v1359, %v1364
      %s1366 = smul.u32 %s1185, 8
      %s1367 = scalar_lea.vmem [#allocation16], %s1366
      %1368 = vst.msk [vmem:[%s1367] sm:$0xff] %vm722, %v1365
      %s1369 = smul.u32 %s1186, 8
      %s1370 = scalar_lea.vmem [#allocation3], %s1369
      %v1371 = vld [vmem:[%s1370] sm:$0xff]
      %s1372 = scalar_lea.vmem [#allocation2], %s1369
      %v1373 = vld [vmem:[%s1372] sm:$0xff]
      %v1374 = vmul.f32 %v1371, %v1365
      %v1376 = vsel %vm722, %v1374, 0
      %1378 = vmatprep.subr.mxu0 0.0
      %1379 = vmatpush1.msra.mxu0 %v1169
      %1380 = vmatprep.subr.mxu0 0.0
      %1381 = vmatpush1.msra.mxu0 %v1170
      %1382 = vmatprep.subr.mxu0 0.0
      %1383 = vmatpush1.msra.mxu0 %v1171
      %1384 = vmatprep.subr.mxu0 0.0
      %1385 = vmatpush1.msra.mxu0 %v1172
      %1386 = vmatprep.subr.mxu0 0.0
      %1387 = vmatpush1.msra.mxu0 0.0
      %1388 = vmatprep.subr.mxu0 0.0
      %1389 = vmatpush1.msra.mxu0 0.0
      %1390 = vmatprep.subr.mxu0 0.0
      %1391 = vmatpush1.msra.mxu0 0.0
      %1392 = vmatprep.subr.mxu0 0.0
      %1393 = vmatpush1.msra.mxu0 0.0
      %1394 = vmatprep.subr.mxu0 0.0
      %1395 = vmatpush1.msra.mxu0 0.0
      %1396 = vmatprep.subr.mxu0 0.0
      %1397 = vmatpush1.msra.mxu0 0.0
      %1398 = vmatprep.subr.mxu0 0.0
      %1399 = vmatpush1.msra.mxu0 0.0
      %1400 = vmatprep.subr.mxu0 0.0
      %1401 = vmatpush1.msra.mxu0 0.0
      %1402 = vmatprep.subr.mxu0 0.0
      %1403 = vmatpush1.msra.mxu0 0.0
      %1404 = vmatprep.subr.mxu0 0.0
      %1405 = vmatpush1.msra.mxu0 0.0
      %1406 = vmatprep.subr.mxu0 0.0
      %1407 = vmatpush1.msra.mxu0 0.0
      %1408 = vmatprep.subr.mxu0 0.0
      %1409 = vmatpush1.msra.mxu0 0.0
      %1410 = vmatprep.subr.mxu0 0.0
      %1411 = vmatpush1.msra.mxu0 0.0
      %1412 = vmatprep.subr.mxu0 0.0
      %1413 = vmatpush1.msra.mxu0 0.0
      %1414 = vmatprep.subr.mxu0 0.0
      %1415 = vmatpush1.msra.mxu0 0.0
      %1416 = vmatprep.subr.mxu0 0.0
      %1417 = vmatpush1.msra.mxu0 0.0
      %1418 = vmatprep.subr.mxu0 0.0
      %1419 = vmatpush1.msra.mxu0 0.0
      %1420 = vmatprep.subr.mxu0 0.0
      %1421 = vmatpush1.msra.mxu0 0.0
      %1422 = vmatprep.subr.mxu0 0.0
      %1423 = vmatpush1.msra.mxu0 0.0
      %1424 = vmatprep.subr.mxu0 0.0
      %1425 = vmatpush1.msra.mxu0 0.0
      %1426 = vmatprep.subr.mxu0 0.0
      %1427 = vmatpush1.msra.mxu0 0.0
      %1428 = vmatprep.subr.mxu0 0.0
      %1429 = vmatpush1.msra.mxu0 0.0
      %1430 = vmatprep.subr.mxu0 0.0
      %1431 = vmatpush1.msra.mxu0 0.0
      %1432 = vmatprep.subr.mxu0 0.0
      %1433 = vmatpush1.msra.mxu0 0.0
      %1434 = vmatprep.subr.mxu0 0.0
      %1435 = vmatpush1.msra.mxu0 0.0
      %1436 = vmatprep.subr.mxu0 0.0
      %1437 = vmatpush1.msra.mxu0 0.0
      %1438 = vmatprep.subr.mxu0 0.0
      %1439 = vmatpush1.msra.mxu0 0.0
      %1440 = vmatprep.subr.mxu0 0.0
      %1441 = vmatpush1.msra.mxu0 0.0
      %1442 = vmatprep.mubr.f32.mxu0 0.0
      %1443 = vmatmul.mubr.f32.gmra.mrb[0].mxu0 %v1376
      %v1444 = vpop.f32.mrb[0].mxu0
      %v1445 = vadd.f32 0.0, %v1444
      %v1446 = vpop.f32.mrb[0].mxu0
      %1447 = vdwg.mxu0
      %v1448 = vadd.f32 %v1373, %v1445
      %v1449 = vxor.u32 %v1448, 2147483648
      %v1450 = vmul.f32 %v1449, 1.442695
      %v1451 = vpow.pop %v1450
      %v1452 = vadd.f32 %v1451, 1.0
      %v1453 = vrcp.pop %v1452
      %v1454 = vmul.f32 1.0, %v1453
      %1455 = vrot.lane.b32.xlu0 %v1374, 32
      %v1456 = vpop.permute.xlu0 %1455
      %v1458 = vmul.f32 %v1454, %v1456
      %1460 = vrot.lane.b32.xlu0 %v1458, 96
      %v1461 = vpop.permute.xlu0 %1460
      %v1462 = vsel %vm722, %v1461, 0
      %1464 = vmatprep.subr.mxu0 0.0
      %1465 = vmatpush1.msra.mxu0 %v1173
      %1466 = vmatprep.subr.mxu0 0.0
      %1467 = vmatpush1.msra.mxu0 %v1174
      %1468 = vmatprep.subr.mxu0 0.0
      %1469 = vmatpush1.msra.mxu0 %v1175
      %1470 = vmatprep.subr.mxu0 0.0
      %1471 = vmatpush1.msra.mxu0 %v1176
      %1472 = vmatprep.subr.mxu0 0.0
      %1473 = vmatpush1.msra.mxu0 0.0
      %1474 = vmatprep.subr.mxu0 0.0
      %1475 = vmatpush1.msra.mxu0 0.0
      %1476 = vmatprep.subr.mxu0 0.0
      %1477 = vmatpush1.msra.mxu0 0.0
      %1478 = vmatprep.subr.mxu0 0.0
      %1479 = vmatpush1.msra.mxu0 0.0
      %1480 = vmatprep.subr.mxu0 0.0
      %1481 = vmatpush1.msra.mxu0 0.0
      %1482 = vmatprep.subr.mxu0 0.0
      %1483 = vmatpush1.msra.mxu0 0.0
      %1484 = vmatprep.subr.mxu0 0.0
      %1485 = vmatpush1.msra.mxu0 0.0
      %1486 = vmatprep.subr.mxu0 0.0
      %1487 = vmatpush1.msra.mxu0 0.0
      %1488 = vmatprep.subr.mxu0 0.0
      %1489 = vmatpush1.msra.mxu0 0.0
      %1490 = vmatprep.subr.mxu0 0.0
      %1491 = vmatpush1.msra.mxu0 0.0
      %1492 = vmatprep.subr.mxu0 0.0
      %1493 = vmatpush1.msra.mxu0 0.0
      %1494 = vmatprep.subr.mxu0 0.0
      %1495 = vmatpush1.msra.mxu0 0.0
      %1496 = vmatprep.subr.mxu0 0.0
      %1497 = vmatpush1.msra.mxu0 0.0
      %1498 = vmatprep.subr.mxu0 0.0
      %1499 = vmatpush1.msra.mxu0 0.0
      %1500 = vmatprep.subr.mxu0 0.0
      %1501 = vmatpush1.msra.mxu0 0.0
      %1502 = vmatprep.subr.mxu0 0.0
      %1503 = vmatpush1.msra.mxu0 0.0
      %1504 = vmatprep.subr.mxu0 0.0
      %1505 = vmatpush1.msra.mxu0 0.0
      %1506 = vmatprep.subr.mxu0 0.0
      %1507 = vmatpush1.msra.mxu0 0.0
      %1508 = vmatprep.subr.mxu0 0.0
      %1509 = vmatpush1.msra.mxu0 0.0
      %1510 = vmatprep.subr.mxu0 0.0
      %1511 = vmatpush1.msra.mxu0 0.0
      %1512 = vmatprep.subr.mxu0 0.0
      %1513 = vmatpush1.msra.mxu0 0.0
      %1514 = vmatprep.subr.mxu0 0.0
      %1515 = vmatpush1.msra.mxu0 0.0
      %1516 = vmatprep.subr.mxu0 0.0
      %1517 = vmatpush1.msra.mxu0 0.0
      %1518 = vmatprep.subr.mxu0 0.0
      %1519 = vmatpush1.msra.mxu0 0.0
      %1520 = vmatprep.subr.mxu0 0.0
      %1521 = vmatpush1.msra.mxu0 0.0
      %1522 = vmatprep.subr.mxu0 0.0
      %1523 = vmatpush1.msra.mxu0 0.0
      %1524 = vmatprep.subr.mxu0 0.0
      %1525 = vmatpush1.msra.mxu0 0.0
      %1526 = vmatprep.subr.mxu0 0.0
      %1527 = vmatpush1.msra.mxu0 0.0
      %1528 = vmatprep.mubr.f32.mxu0 0.0
      %1529 = vmatmul.mubr.f32.gmra.mrb[0].mxu0 %v1462
      %v1530 = vpop.f32.mrb[0].mxu0
      %v1531 = vadd.f32 0.0, %v1530
      %v1532 = vpop.f32.mrb[0].mxu0
      %1533 = vdwg.mxu0
      %1535 = vrot.lane.b32.xlu0 %v1531, 64
      %v1536 = vpop.permute.xlu0 %1535
      %v1538 = vadd.f32 %v1373, %v1536
      %v1539 = vtanh.pop %v1538
      %v1540 = vsub.f32 1.0, %v1454
      %v1541 = vmul.f32 %v1540, %v1374
      %1543 = vrot.lane.b32.xlu0 %v1539, 64
      %v1544 = vpop.permute.xlu0 %1543
      %v1546 = vmul.f32 %v1454, %v1544
      %v1547 = vadd.f32 %v1541, %v1546
      %s1548 = scalar_lea.vmem [#allocation16], %s1369
      %1549 = vst.msk [vmem:[%s1548] sm:$0xff] %vm722, %v1547
    $region94: #{grud_forward_time_major.1} parent=1 // loop_footer
      %s1183 = sadd.s32 1, %s1179
    $region95: #{grud_forward_time_major.1} parent=1 // loop_footer_branch
      %1178 = sbr.rel target = $region91
    $region96: #{grud_forward_time_major.1} parent=1 // loop_exit
      _
    %1550 = vst.msk [vmem:[#allocation17] sm:$0xff] %vm722, %v1184
    // Predicated region
    $region97: #{grud_forward_time_major.1} parent=1 // pred_check
      _
    $region98: #{grud_forward_time_major.1} parent=1 // pred_check_branch
      %1552 = sbr.rel (0) target = $region100
    $region99: #{grud_forward_time_major.1} parent=1 // pred_region
      %s1554 = ssub.s32 2048, 2048
      %1555 = vsyncadd [#allocation6], %s1554
      %s1556 = sshll.u32 [#allocation16], 4
      %s1557 = int_to_ptr.vmem [resolvable:$true] %s1556
      %1562 = dma.vmem_to_hbm [thread:$0]  %s1557, 2048, %s14, [#allocation6], 128, 128, 8
    $region100: #{grud_forward_time_major.1} parent=1 // pred_fallthru
      _
    // Predicated region
    $region101: #{grud_forward_time_major.1} parent=1 // pred_check
      _
    $region102: #{grud_forward_time_major.1} parent=1 // pred_check_branch
      %1564 = sbr.rel (0) target = $region104
    $region103: #{grud_forward_time_major.1} parent=1 // pred_region
      %s1566 = ssub.s32 128, 128
      %1567 = vsyncadd [#allocation18], %s1566
      %s1569 = sshll.u32 [#allocation17], 4
      %s1570 = int_to_ptr.vmem [resolvable:$true] %s1569
      %1572 = dma.vmem_to_hbm [thread:$0]  %s1570, 128, %s15, [#allocation18]
    $region104: #{grud_forward_time_major.1} parent=1 // pred_fallthru
      _
    // Predicated region
    $region105: #{grud_forward_time_major.1} parent=1 // pred_check
      _
    $region106: #{grud_forward_time_major.1} parent=1 // pred_check_branch
      %1574 = sbr.rel (0) target = $region108
    $region107: #{grud_forward_time_major.1} parent=1 // pred_region
      %1575 = dma.done [#allocation6], 2048
    $region108: #{grud_forward_time_major.1} parent=1 // pred_fallthru
      _
    // Predicated region
    $region109: #{grud_forward_time_major.1} parent=1 // pred_check
      _
    $region110: #{grud_forward_time_major.1} parent=1 // pred_check_branch
      %1577 = sbr.rel (0) target = $region112
    $region111: #{grud_forward_time_major.1} parent=1 // pred_region
      %1578 = dma.done [#allocation18], 128
    $region112: #{grud_forward_time_major.1} parent=1 // pred_fallthru
      _
    %1579 = vsyncpa [#allocation5], 1
    %1580 = vsyncpa [#allocation8], 1
    %1581 = vsyncpa [#allocation11], 1
    %1582 = vsyncpa [#allocation14], 1
    %1583 = vsyncpa [#allocation6], 1
    %1584 = vsyncpa [#allocation18], 1

</llo_original>
